<compile_context>
chip_gen: v7x
topology: tpu7x:2x2x1
jax: 0.10.0
libtpu: 0.0.40
codegen_flags: <defaults>
</compile_context>

<pallas_src>
import functools

import jax
import jax.numpy as jnp
from jax.experimental import pallas as pl
from jax.experimental.pallas import tpu as pltpu

EPS = 1e-5   # nn.LayerNorm default eps
LANE = 128   # TPU lane width


def _round_up(a, b):
    return (a + b - 1) // b * b


def _embed_kernel(x_ref, w1_ref, w2_ref, w3_ref, vecs_ref, o_ref, *, out_ch):
    """One row-tile of the 3x (Linear -> LayerNorm [-> ReLU]) stack."""
    cp = o_ref.shape[-1]                      # lane-padded feature width
    x = x_ref[...].astype(jnp.bfloat16)

    vecs = vecs_ref[...]                      # (16, cp) f32
    b1, g1, be1 = vecs[0:1], vecs[1:2], vecs[2:3]
    b2, g2, be2 = vecs[3:4], vecs[4:5], vecs[5:6]
    b3, g3, be3 = vecs[6:7], vecs[7:8], vecs[8:9]

    # Mask of the real (unpadded) feature lanes.
    mask = jax.lax.broadcasted_iota(jnp.int32, (1, cp), 1) < out_ch
    inv_c = jnp.float32(1.0 / out_ch)

    def layernorm(h, gamma, beta):
        # Padded lanes of h are exactly 0 (zero weight cols / zero bias), so a
        # plain sum equals the true sum; variance is masked explicitly.
        mean = jnp.sum(h, axis=-1, keepdims=True) * inv_c
        c = jnp.where(mask, h - mean, 0.0)
        var = jnp.sum(c * c, axis=-1, keepdims=True) * inv_c
        return c * jax.lax.rsqrt(var + EPS) * gamma + beta

    # Block 1: Linear -> LayerNorm -> ReLU  (K = in_channel, padded MXU K-dim;
    # kernel is HBM-bound at these widths so this is fine).
    h = jnp.dot(x, w1_ref[...], preferred_element_type=jnp.float32) + b1
    h = jnp.maximum(layernorm(h, g1, be1), 0.0)

    # Block 2: Linear -> LayerNorm -> ReLU
    h = jnp.dot(h.astype(jnp.bfloat16), w2_ref[...],
                preferred_element_type=jnp.float32) + b2
    h = jnp.maximum(layernorm(h, g2, be2), 0.0)

    # Block 3: Linear -> LayerNorm
    h = jnp.dot(h.astype(jnp.bfloat16), w3_ref[...],
                preferred_element_type=jnp.float32) + b3
    o_ref[...] = layernorm(h, g3, be3).astype(o_ref.dtype)


def single_input_embedding(x, params, *, tile_n=256):
    """x: [N, in_channel] float32.  params: dict of f32 weights (see init_params)."""
    N, in_ch = x.shape
    out_ch = params["w1"].shape[1]
    cp = _round_up(out_ch, LANE)              # lane-dense feature width

    # --- wrapper-side layout plumbing (padding / packing), kept out of the kernel ---
    w1 = jnp.zeros((in_ch, cp), jnp.bfloat16).at[:, :out_ch].set(
        params["w1"].astype(jnp.bfloat16))
    w2 = jnp.zeros((cp, cp), jnp.bfloat16).at[:out_ch, :out_ch].set(
        params["w2"].astype(jnp.bfloat16))
    w3 = jnp.zeros((cp, cp), jnp.bfloat16).at[:out_ch, :out_ch].set(
        params["w3"].astype(jnp.bfloat16))

    vec_rows = jnp.stack(
        [params[k] for k in ("b1", "g1", "be1", "b2", "g2", "be2", "b3", "g3", "be3")],
        axis=0).astype(jnp.float32)           # (9, out_ch)
    vecs = jnp.zeros((16, cp), jnp.float32).at[:9, :out_ch].set(vec_rows)

    # Row tiling: pad N up to a multiple of the tile.
    tile_n = min(tile_n, _round_up(max(N, 1), 8))
    n_pad = _round_up(N, tile_n)
    xp = x if n_pad == N else jnp.zeros((n_pad, in_ch), x.dtype).at[:N].set(x)

    grid = (n_pad // tile_n,)
    kernel = functools.partial(_embed_kernel, out_ch=out_ch)

    out = pl.pallas_call(
        kernel,
        out_shape=jax.ShapeDtypeStruct((n_pad, cp), x.dtype),
        grid=grid,
        in_specs=[
            pl.BlockSpec((tile_n, in_ch), lambda i: (i, 0)),   # x: tiled over rows
            pl.BlockSpec((in_ch, cp), lambda i: (0, 0)),       # w1: resident
            pl.BlockSpec((cp, cp), lambda i: (0, 0)),          # w2: resident
            pl.BlockSpec((cp, cp), lambda i: (0, 0)),          # w3: resident
            pl.BlockSpec((16, cp), lambda i: (0, 0)),          # packed bias/gamma/beta
        ],
        out_specs=pl.BlockSpec((tile_n, cp), lambda i: (i, 0)),
        compiler_params=pltpu.CompilerParams(
            dimension_semantics=("parallel",),                 # 2 TCs on v7x
            vmem_limit_bytes=32 * 1024 * 1024,                 # safe on v5e/v6e/v7x
        ),
    )(xp, w1, w2, w3, vecs)

    return out[:N, :out_ch]


def _xavier_uniform(key, fan_in, fan_out):
    # torch.nn.init.xavier_uniform_ on a Linear weight [out, in]; built directly
    # transposed as [in, out] (same distribution).
    limit = (6.0 / (fan_in + fan_out)) ** 0.5
    return jax.random.uniform(
        key, (fan_in, fan_out), dtype=jnp.float32, minval=-limit, maxval=limit)


def init_params(key, in_channel, out_channel):
    k1, k2, k3 = jax.random.split(key, 3)
    zeros = jnp.zeros((out_channel,), jnp.float32)
    ones = jnp.ones((out_channel,), jnp.float32)
    return {
        # Linear weights pre-transposed to [in, out]; biases zero (module init).
        "w1": _xavier_uniform(k1, in_channel, out_channel), "b1": zeros,
        "g1": ones, "be1": zeros,   # LayerNorm affine defaults
        "w2": _xavier_uniform(k2, out_channel, out_channel), "b2": zeros,
        "g2": ones, "be2": zeros,
        "w3": _xavier_uniform(k3, out_channel, out_channel), "b3": zeros,
        "g3": ones, "be3": zeros,
    }


def _reference(x, p):
    """Pure-JAX reference mirroring the kernel numerics (bf16 matmul, f32 accum)."""
    def ln(h, g, b):
        m = jnp.mean(h, axis=-1, keepdims=True)
        v = jnp.mean((h - m) ** 2, axis=-1, keepdims=True)
        return (h - m) * jax.lax.rsqrt(v + EPS) * g + b

    def lin(h, w, b):
        return jnp.dot(h.astype(jnp.bfloat16), w.astype(jnp.bfloat16),
                       preferred_element_type=jnp.float32) + b

    h = jnp.maximum(ln(lin(x, p["w1"], p["b1"]), p["g1"], p["be1"]), 0.0)
    h = jnp.maximum(ln(lin(h, p["w2"], p["b2"]), p["g2"], p["be2"]), 0.0)
    return ln(lin(h, p["w3"], p["b3"]), p["g3"], p["be3"])


if __name__ == "__main__":
    in_channel, out_channel, n_tokens = 4, 32, 300   # non-multiple of tile on purpose

    key = jax.random.PRNGKey(0)
    kx, kp = jax.random.split(key)
    x = jax.random.normal(kx, (n_tokens, in_channel), dtype=jnp.float32)
    params = init_params(kp, in_channel, out_channel)

    out = single_input_embedding(x, params, tile_n=256)
    out = jax.block_until_ready(out)

    ref = _reference(x, params)
    assert out.shape == (n_tokens, out_channel)
    assert jnp.allclose(out, ref, atol=2e-3, rtol=2e-3), float(jnp.max(jnp.abs(out - ref)))

    print("KERNEL_OK")
</pallas_src>

<mosaic_0001>
module attributes {stable_mosaic.version = 11 : i64} {
  func.func @_embed_kernel(%arg0: i32, %arg1: memref<256x4xf32, #tpu.memory_space<vmem>>, %arg2: memref<4x128xbf16, #tpu.memory_space<vmem>>, %arg3: memref<128x128xbf16, #tpu.memory_space<vmem>>, %arg4: memref<128x128xbf16, #tpu.memory_space<vmem>>, %arg5: memref<16x128xf32, #tpu.memory_space<vmem>>, %arg6: memref<256x128xf32, #tpu.memory_space<vmem>>) attributes {dimension_semantics = [#tpu.dimension_semantics<parallel>], iteration_bounds = array<i64: 2>, scalar_prefetch = 0 : i64, scratch_operands = 0 : i64, tpu.core_type = #tpu.core_type<tc>, window_params = [{transform_indices = @transform_0, window_bounds = array<i64: 256, 4>}, {pipeline_mode = #tpu.pipeline_mode<synchronous>, transform_indices = @transform_1, window_bounds = array<i64: 4, 128>}, {pipeline_mode = #tpu.pipeline_mode<synchronous>, transform_indices = @transform_2, window_bounds = array<i64: 128, 128>}, {pipeline_mode = #tpu.pipeline_mode<synchronous>, transform_indices = @transform_3, window_bounds = array<i64: 128, 128>}, {pipeline_mode = #tpu.pipeline_mode<synchronous>, transform_indices = @transform_4, window_bounds = array<i64: 16, 128>}, {transform_indices = @transform_5, window_bounds = array<i64: 256, 128>}]} {
    %c0 = arith.constant 0 : index
    %c0_0 = arith.constant 0 : index
    %0 = vector.load %arg1[%c0, %c0_0] : memref<256x4xf32, #tpu.memory_space<vmem>>, vector<256x4xf32>
    %1 = arith.truncf %0 : vector<256x4xf32> to vector<256x4xbf16>
    %c0_1 = arith.constant 0 : index
    %c0_2 = arith.constant 0 : index
    %2 = vector.load %arg5[%c0_1, %c0_2] : memref<16x128xf32, #tpu.memory_space<vmem>>, vector<16x128xf32>
    %3 = vector.extract_strided_slice %2 {offsets = [0, 0], sizes = [1, 128], strides = [1, 1]} : vector<16x128xf32> to vector<1x128xf32>
    %4 = vector.extract_strided_slice %2 {offsets = [1, 0], sizes = [1, 128], strides = [1, 1]} : vector<16x128xf32> to vector<1x128xf32>
    %5 = vector.extract_strided_slice %2 {offsets = [2, 0], sizes = [1, 128], strides = [1, 1]} : vector<16x128xf32> to vector<1x128xf32>
    %6 = vector.extract_strided_slice %2 {offsets = [3, 0], sizes = [1, 128], strides = [1, 1]} : vector<16x128xf32> to vector<1x128xf32>
    %7 = vector.extract_strided_slice %2 {offsets = [4, 0], sizes = [1, 128], strides = [1, 1]} : vector<16x128xf32> to vector<1x128xf32>
    %8 = vector.extract_strided_slice %2 {offsets = [5, 0], sizes = [1, 128], strides = [1, 1]} : vector<16x128xf32> to vector<1x128xf32>
    %9 = vector.extract_strided_slice %2 {offsets = [6, 0], sizes = [1, 128], strides = [1, 1]} : vector<16x128xf32> to vector<1x128xf32>
    %10 = vector.extract_strided_slice %2 {offsets = [7, 0], sizes = [1, 128], strides = [1, 1]} : vector<16x128xf32> to vector<1x128xf32>
    %11 = vector.extract_strided_slice %2 {offsets = [8, 0], sizes = [1, 128], strides = [1, 1]} : vector<16x128xf32> to vector<1x128xf32>
    %12 = tpu.iota {dimensions = array<i32: 1>} : vector<1x128xi32>
    %c32_i32 = arith.constant 32 : i32
    %13 = vector.broadcast %c32_i32 : i32 to vector<1x128xi32>
    %14 = arith.cmpi slt, %12, %13 : vector<1x128xi32>
    %c0_3 = arith.constant 0 : index
    %c0_4 = arith.constant 0 : index
    %15 = vector.load %arg2[%c0_3, %c0_4] : memref<4x128xbf16, #tpu.memory_space<vmem>>, vector<4x128xbf16>
    %cst = arith.constant dense<0.000000e+00> : vector<256x128xf32>
    %16 = tpu.matmul %1, %15, %cst {dimension_numbers = #tpu.dot_dimension_numbers<[1], [0], [0], [1], [0, 0, 1, 1], [], []>} : vector<256x4xbf16>, vector<4x128xbf16>, vector<256x128xf32> -> vector<256x128xf32>
    %17 = vector.broadcast %3 : vector<1x128xf32> to vector<256x128xf32>
    %18 = arith.addf %16, %17 : vector<256x128xf32>
    %cst_5 = arith.constant dense<0.000000e+00> : vector<256xf32>
    %19 = vector.multi_reduction <add>, %18, %cst_5 [1] : vector<256x128xf32> to vector<256xf32>
    %20 = vector.shape_cast %19 : vector<256xf32> to vector<256x1xf32>
    %cst_6 = arith.constant 3.125000e-02 : f32
    %21 = vector.broadcast %cst_6 : f32 to vector<256x1xf32>
    %22 = arith.mulf %20, %21 : vector<256x1xf32>
    %23 = vector.broadcast %22 : vector<256x1xf32> to vector<256x128xf32>
    %24 = arith.subf %18, %23 : vector<256x128xf32>
    %cst_7 = arith.constant 0.000000e+00 : f32
    %25 = vector.shape_cast %14 : vector<1x128xi1> to vector<1x128xi1>
    %26 = vector.broadcast %25 : vector<1x128xi1> to vector<256x128xi1>
    %27 = vector.broadcast %cst_7 : f32 to vector<256x128xf32>
    %28 = arith.select %26, %24, %27 : vector<256x128xi1>, vector<256x128xf32>
    %29 = arith.mulf %28, %28 : vector<256x128xf32>
    %cst_8 = arith.constant dense<0.000000e+00> : vector<256xf32>
    %30 = vector.multi_reduction <add>, %29, %cst_8 [1] : vector<256x128xf32> to vector<256xf32>
    %31 = vector.shape_cast %30 : vector<256xf32> to vector<256x1xf32>
    %cst_9 = arith.constant 3.125000e-02 : f32
    %32 = vector.broadcast %cst_9 : f32 to vector<256x1xf32>
    %33 = arith.mulf %31, %32 : vector<256x1xf32>
    %cst_10 = arith.constant 9.99999974E-6 : f32
    %34 = vector.broadcast %cst_10 : f32 to vector<256x1xf32>
    %35 = arith.addf %33, %34 : vector<256x1xf32>
    %36 = math.rsqrt %35 : vector<256x1xf32>
    %37 = vector.broadcast %36 : vector<256x1xf32> to vector<256x128xf32>
    %38 = arith.mulf %28, %37 : vector<256x128xf32>
    %39 = vector.broadcast %4 : vector<1x128xf32> to vector<256x128xf32>
    %40 = arith.mulf %38, %39 : vector<256x128xf32>
    %41 = vector.broadcast %5 : vector<1x128xf32> to vector<256x128xf32>
    %42 = arith.addf %40, %41 : vector<256x128xf32>
    %cst_11 = arith.constant 0.000000e+00 : f32
    %43 = vector.broadcast %cst_11 : f32 to vector<256x128xf32>
    %44 = arith.maximumf %42, %43 : vector<256x128xf32>
    %45 = arith.truncf %44 : vector<256x128xf32> to vector<256x128xbf16>
    %c0_12 = arith.constant 0 : index
    %c0_13 = arith.constant 0 : index
    %46 = vector.load %arg3[%c0_12, %c0_13] : memref<128x128xbf16, #tpu.memory_space<vmem>>, vector<128x128xbf16>
    %cst_14 = arith.constant dense<0.000000e+00> : vector<256x128xf32>
    %47 = tpu.matmul %45, %46, %cst_14 {dimension_numbers = #tpu.dot_dimension_numbers<[1], [0], [0], [1], [0, 0, 1, 1], [], []>} : vector<256x128xbf16>, vector<128x128xbf16>, vector<256x128xf32> -> vector<256x128xf32>
    %48 = vector.broadcast %6 : vector<1x128xf32> to vector<256x128xf32>
    %49 = arith.addf %47, %48 : vector<256x128xf32>
    %cst_15 = arith.constant dense<0.000000e+00> : vector<256xf32>
    %50 = vector.multi_reduction <add>, %49, %cst_15 [1] : vector<256x128xf32> to vector<256xf32>
    %51 = vector.shape_cast %50 : vector<256xf32> to vector<256x1xf32>
    %cst_16 = arith.constant 3.125000e-02 : f32
    %52 = vector.broadcast %cst_16 : f32 to vector<256x1xf32>
    %53 = arith.mulf %51, %52 : vector<256x1xf32>
    %54 = vector.broadcast %53 : vector<256x1xf32> to vector<256x128xf32>
    %55 = arith.subf %49, %54 : vector<256x128xf32>
    %cst_17 = arith.constant 0.000000e+00 : f32
    %56 = vector.shape_cast %14 : vector<1x128xi1> to vector<1x128xi1>
    %57 = vector.broadcast %56 : vector<1x128xi1> to vector<256x128xi1>
    %58 = vector.broadcast %cst_17 : f32 to vector<256x128xf32>
    %59 = arith.select %57, %55, %58 : vector<256x128xi1>, vector<256x128xf32>
    %60 = arith.mulf %59, %59 : vector<256x128xf32>
    %cst_18 = arith.constant dense<0.000000e+00> : vector<256xf32>
    %61 = vector.multi_reduction <add>, %60, %cst_18 [1] : vector<256x128xf32> to vector<256xf32>
    %62 = vector.shape_cast %61 : vector<256xf32> to vector<256x1xf32>
    %cst_19 = arith.constant 3.125000e-02 : f32
    %63 = vector.broadcast %cst_19 : f32 to vector<256x1xf32>
    %64 = arith.mulf %62, %63 : vector<256x1xf32>
    %cst_20 = arith.constant 9.99999974E-6 : f32
    %65 = vector.broadcast %cst_20 : f32 to vector<256x1xf32>
    %66 = arith.addf %64, %65 : vector<256x1xf32>
    %67 = math.rsqrt %66 : vector<256x1xf32>
    %68 = vector.broadcast %67 : vector<256x1xf32> to vector<256x128xf32>
    %69 = arith.mulf %59, %68 : vector<256x128xf32>
    %70 = vector.broadcast %7 : vector<1x128xf32> to vector<256x128xf32>
    %71 = arith.mulf %69, %70 : vector<256x128xf32>
    %72 = vector.broadcast %8 : vector<1x128xf32> to vector<256x128xf32>
    %73 = arith.addf %71, %72 : vector<256x128xf32>
    %cst_21 = arith.constant 0.000000e+00 : f32
    %74 = vector.broadcast %cst_21 : f32 to vector<256x128xf32>
    %75 = arith.maximumf %73, %74 : vector<256x128xf32>
    %76 = arith.truncf %75 : vector<256x128xf32> to vector<256x128xbf16>
    %c0_22 = arith.constant 0 : index
    %c0_23 = arith.constant 0 : index
    %77 = vector.load %arg4[%c0_22, %c0_23] : memref<128x128xbf16, #tpu.memory_space<vmem>>, vector<128x128xbf16>
    %cst_24 = arith.constant dense<0.000000e+00> : vector<256x128xf32>
    %78 = tpu.matmul %76, %77, %cst_24 {dimension_numbers = #tpu.dot_dimension_numbers<[1], [0], [0], [1], [0, 0, 1, 1], [], []>} : vector<256x128xbf16>, vector<128x128xbf16>, vector<256x128xf32> -> vector<256x128xf32>
    %79 = vector.broadcast %9 : vector<1x128xf32> to vector<256x128xf32>
    %80 = arith.addf %78, %79 : vector<256x128xf32>
    %cst_25 = arith.constant dense<0.000000e+00> : vector<256xf32>
    %81 = vector.multi_reduction <add>, %80, %cst_25 [1] : vector<256x128xf32> to vector<256xf32>
    %82 = vector.shape_cast %81 : vector<256xf32> to vector<256x1xf32>
    %cst_26 = arith.constant 3.125000e-02 : f32
    %83 = vector.broadcast %cst_26 : f32 to vector<256x1xf32>
    %84 = arith.mulf %82, %83 : vector<256x1xf32>
    %85 = vector.broadcast %84 : vector<256x1xf32> to vector<256x128xf32>
    %86 = arith.subf %80, %85 : vector<256x128xf32>
    %cst_27 = arith.constant 0.000000e+00 : f32
    %87 = vector.shape_cast %14 : vector<1x128xi1> to vector<1x128xi1>
    %88 = vector.broadcast %87 : vector<1x128xi1> to vector<256x128xi1>
    %89 = vector.broadcast %cst_27 : f32 to vector<256x128xf32>
    %90 = arith.select %88, %86, %89 : vector<256x128xi1>, vector<256x128xf32>
    %91 = arith.mulf %90, %90 : vector<256x128xf32>
    %cst_28 = arith.constant dense<0.000000e+00> : vector<256xf32>
    %92 = vector.multi_reduction <add>, %91, %cst_28 [1] : vector<256x128xf32> to vector<256xf32>
    %93 = vector.shape_cast %92 : vector<256xf32> to vector<256x1xf32>
    %cst_29 = arith.constant 3.125000e-02 : f32
    %94 = vector.broadcast %cst_29 : f32 to vector<256x1xf32>
    %95 = arith.mulf %93, %94 : vector<256x1xf32>
    %cst_30 = arith.constant 9.99999974E-6 : f32
    %96 = vector.broadcast %cst_30 : f32 to vector<256x1xf32>
    %97 = arith.addf %95, %96 : vector<256x1xf32>
    %98 = math.rsqrt %97 : vector<256x1xf32>
    %99 = vector.broadcast %98 : vector<256x1xf32> to vector<256x128xf32>
    %100 = arith.mulf %90, %99 : vector<256x128xf32>
    %101 = vector.broadcast %10 : vector<1x128xf32> to vector<256x128xf32>
    %102 = arith.mulf %100, %101 : vector<256x128xf32>
    %103 = vector.broadcast %11 : vector<1x128xf32> to vector<256x128xf32>
    %104 = arith.addf %102, %103 : vector<256x128xf32>
    %c0_31 = arith.constant 0 : index
    %c0_32 = arith.constant 0 : index
    %105 = vector.load %arg6[%c0_31, %c0_32] : memref<256x128xf32, #tpu.memory_space<vmem>>, vector<256x128xf32>
    tpu.vector_store %arg6[%c0_31, %c0_32], %104 {strides = array<i32>} : memref<256x128xf32, #tpu.memory_space<vmem>>, vector<256x128xf32>,
    return
  }
  func.func @transform_0(%arg0: i32) -> (i32, i32) {
    %c0_i32 = arith.constant 0 : i32
    %c0_i32_0 = arith.constant 0 : i32
    return %arg0, %c0_i32 : i32, i32
  }
  func.func @transform_1(%arg0: i32) -> (i32, i32) {
    %c0_i32 = arith.constant 0 : i32
    %c0_i32_0 = arith.constant 0 : i32
    %c0_i32_1 = arith.constant 0 : i32
    return %c0_i32, %c0_i32_0 : i32, i32
  }
  func.func @transform_2(%arg0: i32) -> (i32, i32) {
    %c0_i32 = arith.constant 0 : i32
    %c0_i32_0 = arith.constant 0 : i32
    %c0_i32_1 = arith.constant 0 : i32
    return %c0_i32, %c0_i32_0 : i32, i32
  }
  func.func @transform_3(%arg0: i32) -> (i32, i32) {
    %c0_i32 = arith.constant 0 : i32
    %c0_i32_0 = arith.constant 0 : i32
    %c0_i32_1 = arith.constant 0 : i32
    return %c0_i32, %c0_i32_0 : i32, i32
  }
  func.func @transform_4(%arg0: i32) -> (i32, i32) {
    %c0_i32 = arith.constant 0 : i32
    %c0_i32_0 = arith.constant 0 : i32
    %c0_i32_1 = arith.constant 0 : i32
    return %c0_i32, %c0_i32_0 : i32, i32
  }
  func.func @transform_5(%arg0: i32) -> (i32, i32) {
    %c0_i32 = arith.constant 0 : i32
    %c0_i32_0 = arith.constant 0 : i32
    return %arg0, %c0_i32 : i32, i32
  }
}

</mosaic_0001>

<llo_original>
// kernel: tpu_custom_call.1
$region0: #{tpu_custom_call.1}
  #allocation0 [shape = 'u32[]', space=smem, size = 0x4, offset = 0x4, fixed_abs, tag = 'smem constant byte address 0x4 - core index']
  #allocation1 [shape = 'u32[144,128]{1,0:T(1,128)}', space=vmem, size = 0x12000, scoped, tag = 'internal scratch']
  %s0 = inlined_call_operand.vmem [shape: f32[512,4], index: 0, kind: input, shape index: {}]
  %s1 = inlined_call_operand.vmem [shape: bf16[4,128], index: 1, kind: input, shape index: {}]
  %s2 = inlined_call_operand.vmem [shape: bf16[128,128], index: 2, kind: input, shape index: {}]
  %s3 = inlined_call_operand.vmem [shape: bf16[128,128], index: 3, kind: input, shape index: {}]
  %s4 = inlined_call_operand.vmem [shape: f32[16,128], index: 4, kind: input, shape index: {}]
  %s5 = inlined_call_operand.hbm [shape: f32[512,128], index: 5, kind: output, shape index: {}]
  %s6 = sld [smem:[#allocation0]]
  $region53: #{tpu_custom_call.1} parent=0
    _
  %s8 = ssub.s32 1, %s6
  %s9 = scalar_select 0, %s8, %s6
  $region1: #{tpu_custom_call.1} parent=0
    #allocation2 [shape = 'u8[262144]{0}', space=vmem, size = 0x40000, scoped, tag = 'output window, operand 0']
    #allocation3 [shape = 's32[2]{0}', space=sflag, size = 0x8, scoped, tag = 'scoped memory for tpu_custom_call.1']
    %10 = vsyncpa [#allocation3], 0
    %s11 = scalar_lea.sflag [#allocation3], 1
    %12 = vsyncpa %s11, 0
    loop: start=0, step=1, limit=4
    $region2: #{tpu_custom_call.1} parent=1 // loop_pre_header
      _
    $region3: #{tpu_custom_call.1} parent=1 // loop_header
      %s14 = sphi 0, %s18
      %p15 = scmp.ge.s32.totalorder %s14, 4
      %s24 = sphi 0, %s26
      %s27 = sphi 0, %s24
      %s28 = sphi 0, %s27
      %s44 = sphi 0, %s28
      %s48 = sphi 0, %s48
      %s50 = sphi 0, %s48
      %s51 = sphi 0, %s50
      %s65 = sphi 0, %s51
      %s69 = sphi 0, %s69
      %s71 = sphi 0, %s69
      %s72 = sphi 0, %s71
      %s86 = sphi 0, %s72
      %s90 = sphi 0, %s90
      %s92 = sphi 0, %s90
      %s93 = sphi 0, %s92
      %s107 = sphi 0, %s93
      %s111 = sphi 0, %s111
      %s113 = sphi 0, %s111
      %s114 = sphi 0, %s113
      %s128 = sphi 0, %s114
      %s134 = sphi 0, %s136
      %s137 = sphi 0, %s134
      %s138 = sphi 0, %s137
      %s154 = sphi 0, %s138
    $region4: #{tpu_custom_call.1} parent=1 // loop_header_branch
      %17 = sbr.rel (%p15) target = $region8
    $region5: #{tpu_custom_call.1} parent=1 // loop_body
      %s19 = ssub.s32 %s14, 1
      %s20 = ssub.s32 %s14, 2
      %s21 = sadd.s32 %s14, 1
      %s22 = ssub.s32 %s14, %s21
      %p23 = scmp.eq.s32.totalorder %s22, 0
      %s25 = sadd.s32 %s24, 1
      %s26 = scalar_select %p23, %s24, %s25
      %p29 = pneg %p23
      %p30 = scmp.eq.s32.totalorder %s14, 1
      %p31 = por %p29, %p30
      %p32 = scmp.ne.s32.totalorder %s24, %s27
      %p33 = scmp.eq.s32.totalorder %s14, 0
      %p34 = por %p32, %p33
      %p35 = scmp.ne.s32.totalorder %s24, %s27
      %p36 = scmp.eq.s32.totalorder %s19, 1
      %p37 = por %p35, %p36
      %p38 = scmp.ne.s32.totalorder %s27, %s28
      %p39 = scmp.eq.s32.totalorder %s19, 0
      %p40 = por %p38, %p39
      %p41 = scmp.ne.s32.totalorder %s27, %s28
      %p42 = scmp.eq.s32.totalorder %s20, 1
      %p43 = por %p41, %p42
      %p45 = scmp.ne.s32.totalorder %s28, %s44
      %p46 = scmp.eq.s32.totalorder %s20, 0
      %p47 = por %p45, %p46
      %s49 = sadd.s32 %s48, 1
      %p52 = scmp.eq.s32.totalorder %s14, 1
      %p53 = scmp.ne.s32.totalorder %s48, %s50
      %p54 = scmp.eq.s32.totalorder %s14, 0
      %p55 = por %p53, %p54
      %p56 = scmp.ne.s32.totalorder %s48, %s50
      %p57 = scmp.eq.s32.totalorder %s19, 1
      %p58 = por %p56, %p57
      %p59 = scmp.ne.s32.totalorder %s50, %s51
      %p60 = scmp.eq.s32.totalorder %s19, 0
      %p61 = por %p59, %p60
      %p62 = scmp.ne.s32.totalorder %s50, %s51
      %p63 = scmp.eq.s32.totalorder %s20, 1
      %p64 = por %p62, %p63
      %p66 = scmp.ne.s32.totalorder %s51, %s65
      %p67 = scmp.eq.s32.totalorder %s20, 0
      %p68 = por %p66, %p67
      %s70 = sadd.s32 %s69, 1
      %p73 = scmp.eq.s32.totalorder %s14, 1
      %p74 = scmp.ne.s32.totalorder %s69, %s71
      %p75 = scmp.eq.s32.totalorder %s14, 0
      %p76 = por %p74, %p75
      %p77 = scmp.ne.s32.totalorder %s69, %s71
      %p78 = scmp.eq.s32.totalorder %s19, 1
      %p79 = por %p77, %p78
      %p80 = scmp.ne.s32.totalorder %s71, %s72
      %p81 = scmp.eq.s32.totalorder %s19, 0
      %p82 = por %p80, %p81
      %p83 = scmp.ne.s32.totalorder %s71, %s72
      %p84 = scmp.eq.s32.totalorder %s20, 1
      %p85 = por %p83, %p84
      %p87 = scmp.ne.s32.totalorder %s72, %s86
      %p88 = scmp.eq.s32.totalorder %s20, 0
      %p89 = por %p87, %p88
      %s91 = sadd.s32 %s90, 1
      %p94 = scmp.eq.s32.totalorder %s14, 1
      %p95 = scmp.ne.s32.totalorder %s90, %s92
      %p96 = scmp.eq.s32.totalorder %s14, 0
      %p97 = por %p95, %p96
      %p98 = scmp.ne.s32.totalorder %s90, %s92
      %p99 = scmp.eq.s32.totalorder %s19, 1
      %p100 = por %p98, %p99
      %p101 = scmp.ne.s32.totalorder %s92, %s93
      %p102 = scmp.eq.s32.totalorder %s19, 0
      %p103 = por %p101, %p102
      %p104 = scmp.ne.s32.totalorder %s92, %s93
      %p105 = scmp.eq.s32.totalorder %s20, 1
      %p106 = por %p104, %p105
      %p108 = scmp.ne.s32.totalorder %s93, %s107
      %p109 = scmp.eq.s32.totalorder %s20, 0
      %p110 = por %p108, %p109
      %s112 = sadd.s32 %s111, 1
      %p115 = scmp.eq.s32.totalorder %s14, 1
      %p116 = scmp.ne.s32.totalorder %s111, %s113
      %p117 = scmp.eq.s32.totalorder %s14, 0
      %p118 = por %p116, %p117
      %p119 = scmp.ne.s32.totalorder %s111, %s113
      %p120 = scmp.eq.s32.totalorder %s19, 1
      %p121 = por %p119, %p120
      %p122 = scmp.ne.s32.totalorder %s113, %s114
      %p123 = scmp.eq.s32.totalorder %s19, 0
      %p124 = por %p122, %p123
      %p125 = scmp.ne.s32.totalorder %s113, %s114
      %p126 = scmp.eq.s32.totalorder %s20, 1
      %p127 = por %p125, %p126
      %p129 = scmp.ne.s32.totalorder %s114, %s128
      %p130 = scmp.eq.s32.totalorder %s20, 0
      %p131 = por %p129, %p130
      %s132 = ssub.s32 %s14, %s21
      %p133 = scmp.eq.s32.totalorder %s132, 0
      %s135 = sadd.s32 %s134, 1
      %s136 = scalar_select %p133, %s134, %s135
      %p139 = pneg %p133
      %p140 = scmp.eq.s32.totalorder %s14, 1
      %p141 = por %p139, %p140
      %p142 = scmp.ne.s32.totalorder %s134, %s137
      %p143 = scmp.eq.s32.totalorder %s14, 0
      %p144 = por %p142, %p143
      %p145 = scmp.ne.s32.totalorder %s134, %s137
      %p146 = scmp.eq.s32.totalorder %s19, 1
      %p147 = por %p145, %p146
      %p148 = scmp.ne.s32.totalorder %s137, %s138
      %p149 = scmp.eq.s32.totalorder %s19, 0
      %p150 = por %p148, %p149
      %p151 = scmp.ne.s32.totalorder %s137, %s138
      %p152 = scmp.eq.s32.totalorder %s20, 1
      %p153 = por %p151, %p152
      %p155 = scmp.ne.s32.totalorder %s138, %s154
      %p156 = scmp.eq.s32.totalorder %s20, 0
      %p157 = por %p155, %p156
      %p158 = scmp.le.s32.totalorder 1, %s14
      %p159 = scmp.lt.s32.totalorder %s14, 3
      %p160 = pnand %p158, %p159
      %p161 = pneg %p160
      // Predicated region
      $region9: #{tpu_custom_call.1} parent=5 // pred_check
        _
      $region10: #{tpu_custom_call.1} parent=5 // pred_check_branch
        %163 = sbr.rel (%p160) target = $region12
      $region11: #{tpu_custom_call.1} parent=5 // pred_region
        %s164 = ssub.s32 %s14, 1
        // Predicated region
        $region13: #{tpu_custom_call.1} parent=11 // pred_check
          %p165 = pneg %p61
        $region14: #{tpu_custom_call.1} parent=11 // pred_check_branch
          %167 = sbr.rel (%p165) target = $region16
        $region15: #{tpu_custom_call.1} parent=11 // pred_region
          _
        $region16: #{tpu_custom_call.1} parent=11 // pred_fallthru
          _
        // Predicated region
        $region17: #{tpu_custom_call.1} parent=11 // pred_check
          %p168 = pneg %p82
        $region18: #{tpu_custom_call.1} parent=11 // pred_check_branch
          %170 = sbr.rel (%p168) target = $region20
        $region19: #{tpu_custom_call.1} parent=11 // pred_region
          _
        $region20: #{tpu_custom_call.1} parent=11 // pred_fallthru
          _
        // Predicated region
        $region21: #{tpu_custom_call.1} parent=11 // pred_check
          %p171 = pneg %p103
        $region22: #{tpu_custom_call.1} parent=11 // pred_check_branch
          %173 = sbr.rel (%p171) target = $region24
        $region23: #{tpu_custom_call.1} parent=11 // pred_region
          _
        $region24: #{tpu_custom_call.1} parent=11 // pred_fallthru
          _
        // Predicated region
        $region25: #{tpu_custom_call.1} parent=11 // pred_check
          %p174 = pneg %p124
        $region26: #{tpu_custom_call.1} parent=11 // pred_check_branch
          %176 = sbr.rel (%p174) target = $region28
        $region27: #{tpu_custom_call.1} parent=11 // pred_region
          _
        $region28: #{tpu_custom_call.1} parent=11 // pred_fallthru
          _
      $region12: #{tpu_custom_call.1} parent=5 // pred_fallthru
        _
      %p177 = scmp.lt.s32.totalorder %s14, 2
      // Predicated region
      $region29: #{tpu_custom_call.1} parent=5 // pred_check
        %p178 = pneg %p177
      $region30: #{tpu_custom_call.1} parent=5 // pred_check_branch
        %180 = sbr.rel (%p178) target = $region32
      $region31: #{tpu_custom_call.1} parent=5 // pred_region
        // Predicated region
        $region33: #{tpu_custom_call.1} parent=31 // pred_check
          %p181 = pneg %p34
        $region34: #{tpu_custom_call.1} parent=31 // pred_check_branch
          %183 = sbr.rel (%p181) target = $region36
        $region35: #{tpu_custom_call.1} parent=31 // pred_region
          %s184 = smul.u32 32, %s14
          %p185 = scmp.lt.s32.totalorder %s184, 63
          %s186 = scalar_select %p185, %s184, 63
          %s187 = smul.addr %s186, 8
          %s188 = scalar_lea.vmem %s0, %s187
          %s189 = smul.u32 32, %s14
        $region36: #{tpu_custom_call.1} parent=31 // pred_fallthru
          _
      $region32: #{tpu_custom_call.1} parent=5 // pred_fallthru
        _
      %p190 = scmp.le.s32.totalorder 1, %s14
      %p191 = scmp.lt.s32.totalorder %s14, 3
      %p192 = pnand %p190, %p191
      %p193 = pneg %p192
      // Predicated region
      $region37: #{tpu_custom_call.1} parent=5 // pred_check
        _
      $region38: #{tpu_custom_call.1} parent=5 // pred_check_branch
        %195 = sbr.rel (%p192) target = $region40
      $region39: #{tpu_custom_call.1} parent=5 // pred_region
        %s196 = ssub.s32 %s14, 1
        %s197 = smul.u32 32, %s19
        %p198 = scmp.lt.s32.totalorder %s197, 63
        %s199 = scalar_select %p198, %s197, 63
        %s200 = smul.addr %s199, 8
        %s201 = scalar_lea.vmem %s0, %s200
        %p202 = pneg %p40
        %p203 = pneg %p37
        %p204 = pneg %p61
        %p205 = pneg %p58
        %p206 = pneg %p82
        %p207 = pneg %p79
        %p208 = pneg %p103
        %p209 = pneg %p100
        %p210 = pneg %p124
        %p211 = pneg %p121
        %p212 = pneg %p150
        %p213 = pneg %p147
        %s214 = sand.u32 %s137, 1
        %s215 = scalar_lea.sflag [#allocation3], %s214
        %s216 = sand.u32 %s137, 1
        %s217 = smul.addr %s216, 256
        %s218 = scalar_lea.vmem [#allocation2], %s217
        %s219 = smul.u32 32, %s19
        %p220 = scmp.lt.s32.totalorder %s219, 63
        %s221 = scalar_select %p220, %s219, 63
        %s222 = smul.addr %s221, 8
        %s223 = scalar_lea.vmem %s0, %s222
        %s224 = smul.u32 32, %s19
        %s225 = smul.u32 32, %s19
        %v227 = vld [vmem:[%s223] sm:$0xff]
        %v228 = vld [vmem:[%s223 + $0x8] sm:$0xff]
        %v229 = vld [vmem:[%s223 + $0x10] sm:$0xff]
        %v230 = vld [vmem:[%s223 + $0x18] sm:$0xff]
        %v231 = vld [vmem:[%s223 + $0x20] sm:$0xff]
        %v232 = vld [vmem:[%s223 + $0x28] sm:$0xff]
        %v233 = vld [vmem:[%s223 + $0x30] sm:$0xff]
        %v234 = vld [vmem:[%s223 + $0x38] sm:$0xff]
        %v235 = vld [vmem:[%s223 + $0x40] sm:$0xff]
        %v236 = vld [vmem:[%s223 + $0x48] sm:$0xff]
        %v237 = vld [vmem:[%s223 + $0x50] sm:$0xff]
        %v238 = vld [vmem:[%s223 + $0x58] sm:$0xff]
        %v239 = vld [vmem:[%s223 + $0x60] sm:$0xff]
        %v240 = vld [vmem:[%s223 + $0x68] sm:$0xff]
        %v241 = vld [vmem:[%s223 + $0x70] sm:$0xff]
        %v242 = vld [vmem:[%s223 + $0x78] sm:$0xff]
        %v243 = vld [vmem:[%s223 + $0x80] sm:$0xff]
        %v244 = vld [vmem:[%s223 + $0x88] sm:$0xff]
        %v245 = vld [vmem:[%s223 + $0x90] sm:$0xff]
        %v246 = vld [vmem:[%s223 + $0x98] sm:$0xff]
        %v247 = vld [vmem:[%s223 + $0xa0] sm:$0xff]
        %v248 = vld [vmem:[%s223 + $0xa8] sm:$0xff]
        %v249 = vld [vmem:[%s223 + $0xb0] sm:$0xff]
        %v250 = vld [vmem:[%s223 + $0xb8] sm:$0xff]
        %v251 = vld [vmem:[%s223 + $0xc0] sm:$0xff]
        %v252 = vld [vmem:[%s223 + $0xc8] sm:$0xff]
        %v253 = vld [vmem:[%s223 + $0xd0] sm:$0xff]
        %v254 = vld [vmem:[%s223 + $0xd8] sm:$0xff]
        %v255 = vld [vmem:[%s223 + $0xe0] sm:$0xff]
        %v256 = vld [vmem:[%s223 + $0xe8] sm:$0xff]
        %v257 = vld [vmem:[%s223 + $0xf0] sm:$0xff]
        %v258 = vld [vmem:[%s223 + $0xf8] sm:$0xff]
        %v259 = vpack.c.bf16 %v228, %v227
        %v260 = vpack.c.bf16 %v230, %v229
        %v261 = vpack.c.bf16 %v232, %v231
        %v262 = vpack.c.bf16 %v234, %v233
        %v263 = vpack.c.bf16 %v236, %v235
        %v264 = vpack.c.bf16 %v238, %v237
        %v265 = vpack.c.bf16 %v240, %v239
        %v266 = vpack.c.bf16 %v242, %v241
        %v267 = vpack.c.bf16 %v244, %v243
        %v268 = vpack.c.bf16 %v246, %v245
        %v269 = vpack.c.bf16 %v248, %v247
        %v270 = vpack.c.bf16 %v250, %v249
        %v271 = vpack.c.bf16 %v252, %v251
        %v272 = vpack.c.bf16 %v254, %v253
        %v273 = vpack.c.bf16 %v256, %v255
        %v274 = vpack.c.bf16 %v258, %v257
        %v275 = vld [vmem:[%s4] sm:$0xff]
        %v276 = vld [vmem:[%s4 + $0x8] sm:$0xff]
        %v277 = vlaneseq
        %v278 = vand.u32 %v277, 127
        %vm279 = vcmp.lt.s32.totalorder %v278, 32
        %v280 = vld [vmem:[%s1] sm:$0x3]
        %v281 = vlaneseq
        %v282 = vshrl.u32 %v281, 7
        %v283 = vsub.s32 0, %v282
        %v284 = vrot.slane %v275, %v283
        %vm285 = vcmask 31744
        %v287 = vsel %vm285, %v259, 0
        %v290 = vsel %vm285, %v260, 0
        %v293 = vsel %vm285, %v261, 0
        %v296 = vsel %vm285, %v262, 0
        %v299 = vsel %vm285, %v263, 0
        %v302 = vsel %vm285, %v264, 0
        %v305 = vsel %vm285, %v265, 0
        %v308 = vsel %vm285, %v266, 0
        %v311 = vsel %vm285, %v267, 0
        %v314 = vsel %vm285, %v268, 0
        %v317 = vsel %vm285, %v269, 0
        %v320 = vsel %vm285, %v270, 0
        %v323 = vsel %vm285, %v271, 0
        %v326 = vsel %vm285, %v272, 0
        %v329 = vsel %vm285, %v273, 0
        %v332 = vsel %vm285, %v274, 0
        %vm334 = vcmask 1041408
        %v336 = vsel %vm334, %v280, 0
        %338 = vmatprep.subr.bf16.mxu0 0
        %339 = vmatpush1.bf16.msra.mxu0 %v336
        %340 = vmatprep.subr.bf16.mxu0 0
        %341 = vmatpush1.bf16.msra.mxu0 0
        %342 = vmatprep.subr.bf16.mxu0 0
        %343 = vmatpush1.bf16.msra.mxu0 0
        %344 = vmatprep.subr.bf16.mxu0 0
        %345 = vmatpush1.bf16.msra.mxu0 0
        %346 = vmatprep.subr.bf16.mxu0 0
        %347 = vmatpush1.bf16.msra.mxu0 0
        %348 = vmatprep.subr.bf16.mxu0 0
        %349 = vmatpush1.bf16.msra.mxu0 0
        %350 = vmatprep.subr.bf16.mxu0 0
        %351 = vmatpush1.bf16.msra.mxu0 0
        %352 = vmatprep.subr.bf16.mxu0 0
        %353 = vmatpush1.bf16.msra.mxu0 0
        %354 = vmatprep.subr.bf16.mxu0 0
        %355 = vmatpush1.bf16.msra.mxu0 0
        %356 = vmatprep.subr.bf16.mxu0 0
        %357 = vmatpush1.bf16.msra.mxu0 0
        %358 = vmatprep.subr.bf16.mxu0 0
        %359 = vmatpush1.bf16.msra.mxu0 0
        %360 = vmatprep.subr.bf16.mxu0 0
        %361 = vmatpush1.bf16.msra.mxu0 0
        %362 = vmatprep.subr.bf16.mxu0 0
        %363 = vmatpush1.bf16.msra.mxu0 0
        %364 = vmatprep.subr.bf16.mxu0 0
        %365 = vmatpush1.bf16.msra.mxu0 0
        %366 = vmatprep.subr.bf16.mxu0 0
        %367 = vmatpush1.bf16.msra.mxu0 0
        %368 = vmatprep.subr.bf16.mxu0 0
        %369 = vmatpush1.bf16.msra.mxu0 0
        %370 = vmatprep.mubr.bf16.mxu0 0
        %371 = vmatmul.mubr.bf16.gmra.mrb[0].mxu0 %v287
        %v372 = vpop.f32.mrb[0].mxu0
        %v373 = vadd.f32 %v284, %v372
        %v374 = vpop.f32.mrb[0].mxu0
        %v375 = vpop.f32.mrb[0].mxu0
        %v376 = vadd.f32 %v284, %v375
        %v377 = vpop.f32.mrb[0].mxu0
        %378 = vmatprep.mubr.bf16.mxu0 0
        %379 = vmatmul.mubr.bf16.gmra.mrb[0].mxu0 %v290
        %v380 = vpop.f32.mrb[0].mxu0
        %v381 = vadd.f32 %v284, %v380
        %v382 = vpop.f32.mrb[0].mxu0
        %v383 = vpop.f32.mrb[0].mxu0
        %v384 = vadd.f32 %v284, %v383
        %v385 = vpop.f32.mrb[0].mxu0
        %386 = vmatprep.mubr.bf16.mxu0 0
        %387 = vmatmul.mubr.bf16.gmra.mrb[0].mxu0 %v293
        %v388 = vpop.f32.mrb[0].mxu0
        %v389 = vadd.f32 %v284, %v388
        %v390 = vpop.f32.mrb[0].mxu0
        %v391 = vpop.f32.mrb[0].mxu0
        %v392 = vadd.f32 %v284, %v391
        %v393 = vpop.f32.mrb[0].mxu0
        %394 = vmatprep.mubr.bf16.mxu0 0
        %395 = vmatmul.mubr.bf16.gmra.mrb[0].mxu0 %v296
        %v396 = vpop.f32.mrb[0].mxu0
        %v397 = vadd.f32 %v284, %v396
        %v398 = vpop.f32.mrb[0].mxu0
        %v399 = vpop.f32.mrb[0].mxu0
        %v400 = vadd.f32 %v284, %v399
        %v401 = vpop.f32.mrb[0].mxu0
        %402 = vmatprep.mubr.bf16.mxu0 0
        %403 = vmatmul.mubr.bf16.gmra.mrb[0].mxu0 %v299
        %v404 = vpop.f32.mrb[0].mxu0
        %v405 = vadd.f32 %v284, %v404
        %v406 = vpop.f32.mrb[0].mxu0
        %v407 = vpop.f32.mrb[0].mxu0
        %v408 = vadd.f32 %v284, %v407
        %v409 = vpop.f32.mrb[0].mxu0
        %410 = vmatprep.mubr.bf16.mxu0 0
        %411 = vmatmul.mubr.bf16.gmra.mrb[0].mxu0 %v302
        %v412 = vpop.f32.mrb[0].mxu0
        %v413 = vadd.f32 %v284, %v412
        %v414 = vpop.f32.mrb[0].mxu0
        %v415 = vpop.f32.mrb[0].mxu0
        %v416 = vadd.f32 %v284, %v415
        %v417 = vpop.f32.mrb[0].mxu0
        %418 = vmatprep.mubr.bf16.mxu0 0
        %419 = vmatmul.mubr.bf16.gmra.mrb[0].mxu0 %v305
        %v420 = vpop.f32.mrb[0].mxu0
        %v421 = vadd.f32 %v284, %v420
        %v422 = vpop.f32.mrb[0].mxu0
        %v423 = vpop.f32.mrb[0].mxu0
        %v424 = vadd.f32 %v284, %v423
        %v425 = vpop.f32.mrb[0].mxu0
        %426 = vmatprep.mubr.bf16.mxu0 0
        %427 = vmatmul.mubr.bf16.gmra.mrb[0].mxu0 %v308
        %v428 = vpop.f32.mrb[0].mxu0
        %v429 = vadd.f32 %v284, %v428
        %v430 = vpop.f32.mrb[0].mxu0
        %v431 = vpop.f32.mrb[0].mxu0
        %v432 = vadd.f32 %v284, %v431
        %v433 = vpop.f32.mrb[0].mxu0
        %434 = vmatprep.mubr.bf16.mxu0 0
        %435 = vmatmul.mubr.bf16.gmra.mrb[0].mxu0 %v311
        %v436 = vpop.f32.mrb[0].mxu0
        %v437 = vadd.f32 %v284, %v436
        %v438 = vpop.f32.mrb[0].mxu0
        %v439 = vpop.f32.mrb[0].mxu0
        %v440 = vadd.f32 %v284, %v439
        %v441 = vpop.f32.mrb[0].mxu0
        %442 = vmatprep.mubr.bf16.mxu0 0
        %443 = vmatmul.mubr.bf16.gmra.mrb[0].mxu0 %v314
        %v444 = vpop.f32.mrb[0].mxu0
        %v445 = vadd.f32 %v284, %v444
        %v446 = vpop.f32.mrb[0].mxu0
        %v447 = vpop.f32.mrb[0].mxu0
        %v448 = vadd.f32 %v284, %v447
        %v449 = vpop.f32.mrb[0].mxu0
        %450 = vmatprep.mubr.bf16.mxu0 0
        %451 = vmatmul.mubr.bf16.gmra.mrb[0].mxu0 %v317
        %v452 = vpop.f32.mrb[0].mxu0
        %v453 = vadd.f32 %v284, %v452
        %v454 = vpop.f32.mrb[0].mxu0
        %v455 = vpop.f32.mrb[0].mxu0
        %v456 = vadd.f32 %v284, %v455
        %v457 = vpop.f32.mrb[0].mxu0
        %458 = vmatprep.mubr.bf16.mxu0 0
        %459 = vmatmul.mubr.bf16.gmra.mrb[0].mxu0 %v320
        %v460 = vpop.f32.mrb[0].mxu0
        %v461 = vadd.f32 %v284, %v460
        %v462 = vpop.f32.mrb[0].mxu0
        %v463 = vpop.f32.mrb[0].mxu0
        %v464 = vadd.f32 %v284, %v463
        %v465 = vpop.f32.mrb[0].mxu0
        %466 = vmatprep.mubr.bf16.mxu0 0
        %467 = vmatmul.mubr.bf16.gmra.mrb[0].mxu0 %v323
        %v468 = vpop.f32.mrb[0].mxu0
        %v469 = vadd.f32 %v284, %v468
        %v470 = vpop.f32.mrb[0].mxu0
        %v471 = vpop.f32.mrb[0].mxu0
        %v472 = vadd.f32 %v284, %v471
        %v473 = vpop.f32.mrb[0].mxu0
        %474 = vmatprep.mubr.bf16.mxu0 0
        %475 = vmatmul.mubr.bf16.gmra.mrb[0].mxu0 %v326
        %v476 = vpop.f32.mrb[0].mxu0
        %v477 = vadd.f32 %v284, %v476
        %v478 = vpop.f32.mrb[0].mxu0
        %v479 = vpop.f32.mrb[0].mxu0
        %v480 = vadd.f32 %v284, %v479
        %v481 = vpop.f32.mrb[0].mxu0
        %482 = vmatprep.mubr.bf16.mxu0 0
        %483 = vmatmul.mubr.bf16.gmra.mrb[0].mxu0 %v329
        %v484 = vpop.f32.mrb[0].mxu0
        %v485 = vadd.f32 %v284, %v484
        %v486 = vpop.f32.mrb[0].mxu0
        %v487 = vpop.f32.mrb[0].mxu0
        %v488 = vadd.f32 %v284, %v487
        %v489 = vpop.f32.mrb[0].mxu0
        %490 = vmatprep.mubr.bf16.mxu0 0
        %491 = vmatmul.mubr.bf16.gmra.mrb[0].mxu0 %v332
        %v492 = vpop.f32.mrb[0].mxu0
        %v493 = vadd.f32 %v284, %v492
        %v494 = vpop.f32.mrb[0].mxu0
        %v495 = vpop.f32.mrb[0].mxu0
        %v496 = vadd.f32 %v284, %v495
        %v497 = vpop.f32.mrb[0].mxu0
        %498 = vdwg.mxu0
        %499 = vadd.xlane.f32.xlu0 %v373
        %v500 = vpop.xlane.xlu0 %499
        %501 = vadd.xlane.f32.xlu0 %v376
        %v502 = vpop.xlane.xlu0 %501
        %503 = vadd.xlane.f32.xlu0 %v381
        %v504 = vpop.xlane.xlu0 %503
        %505 = vadd.xlane.f32.xlu0 %v384
        %v506 = vpop.xlane.xlu0 %505
        %507 = vadd.xlane.f32.xlu0 %v389
        %v508 = vpop.xlane.xlu0 %507
        %509 = vadd.xlane.f32.xlu0 %v392
        %v510 = vpop.xlane.xlu0 %509
        %511 = vadd.xlane.f32.xlu0 %v397
        %v512 = vpop.xlane.xlu0 %511
        %513 = vadd.xlane.f32.xlu0 %v400
        %v514 = vpop.xlane.xlu0 %513
        %515 = vadd.xlane.f32.xlu0 %v405
        %v516 = vpop.xlane.xlu0 %515
        %517 = vadd.xlane.f32.xlu0 %v408
        %v518 = vpop.xlane.xlu0 %517
        %519 = vadd.xlane.f32.xlu0 %v413
        %v520 = vpop.xlane.xlu0 %519
        %521 = vadd.xlane.f32.xlu0 %v416
        %v522 = vpop.xlane.xlu0 %521
        %523 = vadd.xlane.f32.xlu0 %v421
        %v524 = vpop.xlane.xlu0 %523
        %525 = vadd.xlane.f32.xlu0 %v424
        %v526 = vpop.xlane.xlu0 %525
        %527 = vadd.xlane.f32.xlu0 %v429
        %v528 = vpop.xlane.xlu0 %527
        %529 = vadd.xlane.f32.xlu0 %v432
        %v530 = vpop.xlane.xlu0 %529
        %531 = vadd.xlane.f32.xlu0 %v437
        %v532 = vpop.xlane.xlu0 %531
        %533 = vadd.xlane.f32.xlu0 %v440
        %v534 = vpop.xlane.xlu0 %533
        %535 = vadd.xlane.f32.xlu0 %v445
        %v536 = vpop.xlane.xlu0 %535
        %537 = vadd.xlane.f32.xlu0 %v448
        %v538 = vpop.xlane.xlu0 %537
        %539 = vadd.xlane.f32.xlu0 %v453
        %v540 = vpop.xlane.xlu0 %539
        %541 = vadd.xlane.f32.xlu0 %v456
        %v542 = vpop.xlane.xlu0 %541
        %543 = vadd.xlane.f32.xlu0 %v461
        %v544 = vpop.xlane.xlu0 %543
        %545 = vadd.xlane.f32.xlu0 %v464
        %v546 = vpop.xlane.xlu0 %545
        %547 = vadd.xlane.f32.xlu0 %v469
        %v548 = vpop.xlane.xlu0 %547
        %549 = vadd.xlane.f32.xlu0 %v472
        %v550 = vpop.xlane.xlu0 %549
        %551 = vadd.xlane.f32.xlu0 %v477
        %v552 = vpop.xlane.xlu0 %551
        %553 = vadd.xlane.f32.xlu0 %v480
        %v554 = vpop.xlane.xlu0 %553
        %555 = vadd.xlane.f32.xlu0 %v485
        %v556 = vpop.xlane.xlu0 %555
        %557 = vadd.xlane.f32.xlu0 %v488
        %v558 = vpop.xlane.xlu0 %557
        %559 = vadd.xlane.f32.xlu0 %v493
        %v560 = vpop.xlane.xlu0 %559
        %561 = vadd.xlane.f32.xlu0 %v496
        %v562 = vpop.xlane.xlu0 %561
        %v563 = vmul.f32 %v500, 0.03125
        %v564 = vmul.f32 %v502, 0.03125
        %v565 = vmul.f32 %v504, 0.03125
        %v566 = vmul.f32 %v506, 0.03125
        %v567 = vmul.f32 %v508, 0.03125
        %v568 = vmul.f32 %v510, 0.03125
        %v569 = vmul.f32 %v512, 0.03125
        %v570 = vmul.f32 %v514, 0.03125
        %v571 = vmul.f32 %v516, 0.03125
        %v572 = vmul.f32 %v518, 0.03125
        %v573 = vmul.f32 %v520, 0.03125
        %v574 = vmul.f32 %v522, 0.03125
        %v575 = vmul.f32 %v524, 0.03125
        %v576 = vmul.f32 %v526, 0.03125
        %v577 = vmul.f32 %v528, 0.03125
        %v578 = vmul.f32 %v530, 0.03125
        %v579 = vmul.f32 %v532, 0.03125
        %v580 = vmul.f32 %v534, 0.03125
        %v581 = vmul.f32 %v536, 0.03125
        %v582 = vmul.f32 %v538, 0.03125
        %v583 = vmul.f32 %v540, 0.03125
        %v584 = vmul.f32 %v542, 0.03125
        %v585 = vmul.f32 %v544, 0.03125
        %v586 = vmul.f32 %v546, 0.03125
        %v587 = vmul.f32 %v548, 0.03125
        %v588 = vmul.f32 %v550, 0.03125
        %v589 = vmul.f32 %v552, 0.03125
        %v590 = vmul.f32 %v554, 0.03125
        %v591 = vmul.f32 %v556, 0.03125
        %v592 = vmul.f32 %v558, 0.03125
        %v593 = vmul.f32 %v560, 0.03125
        %v594 = vmul.f32 %v562, 0.03125
        %v595 = vsub.f32 %v373, %v563
        %v596 = vsub.f32 %v376, %v564
        %v597 = vsub.f32 %v381, %v565
        %v598 = vsub.f32 %v384, %v566
        %v599 = vsub.f32 %v389, %v567
        %v600 = vsub.f32 %v392, %v568
        %v601 = vsub.f32 %v397, %v569
        %v602 = vsub.f32 %v400, %v570
        %v603 = vsub.f32 %v405, %v571
        %v604 = vsub.f32 %v408, %v572
        %v605 = vsub.f32 %v413, %v573
        %v606 = vsub.f32 %v416, %v574
        %v607 = vsub.f32 %v421, %v575
        %v608 = vsub.f32 %v424, %v576
        %v609 = vsub.f32 %v429, %v577
        %v610 = vsub.f32 %v432, %v578
        %v611 = vsub.f32 %v437, %v579
        %v612 = vsub.f32 %v440, %v580
        %v613 = vsub.f32 %v445, %v581
        %v614 = vsub.f32 %v448, %v582
        %v615 = vsub.f32 %v453, %v583
        %v616 = vsub.f32 %v456, %v584
        %v617 = vsub.f32 %v461, %v585
        %v618 = vsub.f32 %v464, %v586
        %v619 = vsub.f32 %v469, %v587
        %v620 = vsub.f32 %v472, %v588
        %v621 = vsub.f32 %v477, %v589
        %v622 = vsub.f32 %v480, %v590
        %v623 = vsub.f32 %v485, %v591
        %v624 = vsub.f32 %v488, %v592
        %v625 = vsub.f32 %v493, %v593
        %v626 = vsub.f32 %v496, %v594
        %v627 = vsel %vm279, 1, 0
        %vm628 = vcmp.eq.s32.totalorder %v627, 1
        %v629 = vsel %vm628, %v595, 0.0
        %v630 = vsel %vm628, %v596, 0.0
        %v631 = vsel %vm628, %v597, 0.0
        %v632 = vsel %vm628, %v598, 0.0
        %v633 = vsel %vm628, %v599, 0.0
        %v634 = vsel %vm628, %v600, 0.0
        %v635 = vsel %vm628, %v601, 0.0
        %v636 = vsel %vm628, %v602, 0.0
        %v637 = vsel %vm628, %v603, 0.0
        %v638 = vsel %vm628, %v604, 0.0
        %v639 = vsel %vm628, %v605, 0.0
        %v640 = vsel %vm628, %v606, 0.0
        %v641 = vsel %vm628, %v607, 0.0
        %v642 = vsel %vm628, %v608, 0.0
        %v643 = vsel %vm628, %v609, 0.0
        %v644 = vsel %vm628, %v610, 0.0
        %v645 = vsel %vm628, %v611, 0.0
        %v646 = vsel %vm628, %v612, 0.0
        %v647 = vsel %vm628, %v613, 0.0
        %v648 = vsel %vm628, %v614, 0.0
        %v649 = vsel %vm628, %v615, 0.0
        %v650 = vsel %vm628, %v616, 0.0
        %v651 = vsel %vm628, %v617, 0.0
        %v652 = vsel %vm628, %v618, 0.0
        %v653 = vsel %vm628, %v619, 0.0
        %v654 = vsel %vm628, %v620, 0.0
        %v655 = vsel %vm628, %v621, 0.0
        %v656 = vsel %vm628, %v622, 0.0
        %v657 = vsel %vm628, %v623, 0.0
        %v658 = vsel %vm628, %v624, 0.0
        %v659 = vsel %vm628, %v625, 0.0
        %v660 = vsel %vm628, %v626, 0.0
        %v661 = vmul.f32 %v629, %v629
        %v662 = vmul.f32 %v630, %v630
        %v663 = vmul.f32 %v631, %v631
        %v664 = vmul.f32 %v632, %v632
        %v665 = vmul.f32 %v633, %v633
        %v666 = vmul.f32 %v634, %v634
        %v667 = vmul.f32 %v635, %v635
        %v668 = vmul.f32 %v636, %v636
        %v669 = vmul.f32 %v637, %v637
        %v670 = vmul.f32 %v638, %v638
        %v671 = vmul.f32 %v639, %v639
        %v672 = vmul.f32 %v640, %v640
        %v673 = vmul.f32 %v641, %v641
        %v674 = vmul.f32 %v642, %v642
        %v675 = vmul.f32 %v643, %v643
        %v676 = vmul.f32 %v644, %v644
        %v677 = vmul.f32 %v645, %v645
        %v678 = vmul.f32 %v646, %v646
        %v679 = vmul.f32 %v647, %v647
        %v680 = vmul.f32 %v648, %v648
        %v681 = vmul.f32 %v649, %v649
        %v682 = vmul.f32 %v650, %v650
        %v683 = vmul.f32 %v651, %v651
        %v684 = vmul.f32 %v652, %v652
        %v685 = vmul.f32 %v653, %v653
        %v686 = vmul.f32 %v654, %v654
        %v687 = vmul.f32 %v655, %v655
        %v688 = vmul.f32 %v656, %v656
        %v689 = vmul.f32 %v657, %v657
        %v690 = vmul.f32 %v658, %v658
        %v691 = vmul.f32 %v659, %v659
        %v692 = vmul.f32 %v660, %v660
        %693 = vadd.xlane.f32.xlu0 %v661
        %v694 = vpop.xlane.xlu0 %693
        %695 = vadd.xlane.f32.xlu0 %v662
        %v696 = vpop.xlane.xlu0 %695
        %697 = vadd.xlane.f32.xlu0 %v663
        %v698 = vpop.xlane.xlu0 %697
        %699 = vadd.xlane.f32.xlu0 %v664
        %v700 = vpop.xlane.xlu0 %699
        %701 = vadd.xlane.f32.xlu0 %v665
        %v702 = vpop.xlane.xlu0 %701
        %703 = vadd.xlane.f32.xlu0 %v666
        %v704 = vpop.xlane.xlu0 %703
        %705 = vadd.xlane.f32.xlu0 %v667
        %v706 = vpop.xlane.xlu0 %705
        %707 = vadd.xlane.f32.xlu0 %v668
        %v708 = vpop.xlane.xlu0 %707
        %709 = vadd.xlane.f32.xlu0 %v669
        %v710 = vpop.xlane.xlu0 %709
        %711 = vadd.xlane.f32.xlu0 %v670
        %v712 = vpop.xlane.xlu0 %711
        %713 = vadd.xlane.f32.xlu0 %v671
        %v714 = vpop.xlane.xlu0 %713
        %715 = vadd.xlane.f32.xlu0 %v672
        %v716 = vpop.xlane.xlu0 %715
        %717 = vadd.xlane.f32.xlu0 %v673
        %v718 = vpop.xlane.xlu0 %717
        %719 = vadd.xlane.f32.xlu0 %v674
        %v720 = vpop.xlane.xlu0 %719
        %721 = vadd.xlane.f32.xlu0 %v675
        %v722 = vpop.xlane.xlu0 %721
        %723 = vadd.xlane.f32.xlu0 %v676
        %v724 = vpop.xlane.xlu0 %723
        %725 = vadd.xlane.f32.xlu0 %v677
        %v726 = vpop.xlane.xlu0 %725
        %727 = vadd.xlane.f32.xlu0 %v678
        %v728 = vpop.xlane.xlu0 %727
        %729 = vadd.xlane.f32.xlu0 %v679
        %v730 = vpop.xlane.xlu0 %729
        %731 = vadd.xlane.f32.xlu0 %v680
        %v732 = vpop.xlane.xlu0 %731
        %733 = vadd.xlane.f32.xlu0 %v681
        %v734 = vpop.xlane.xlu0 %733
        %735 = vadd.xlane.f32.xlu0 %v682
        %v736 = vpop.xlane.xlu0 %735
        %737 = vadd.xlane.f32.xlu0 %v683
        %v738 = vpop.xlane.xlu0 %737
        %739 = vadd.xlane.f32.xlu0 %v684
        %v740 = vpop.xlane.xlu0 %739
        %741 = vadd.xlane.f32.xlu0 %v685
        %v742 = vpop.xlane.xlu0 %741
        %743 = vadd.xlane.f32.xlu0 %v686
        %v744 = vpop.xlane.xlu0 %743
        %745 = vadd.xlane.f32.xlu0 %v687
        %v746 = vpop.xlane.xlu0 %745
        %747 = vadd.xlane.f32.xlu0 %v688
        %v748 = vpop.xlane.xlu0 %747
        %749 = vadd.xlane.f32.xlu0 %v689
        %v750 = vpop.xlane.xlu0 %749
        %751 = vadd.xlane.f32.xlu0 %v690
        %v752 = vpop.xlane.xlu0 %751
        %753 = vadd.xlane.f32.xlu0 %v691
        %v754 = vpop.xlane.xlu0 %753
        %755 = vadd.xlane.f32.xlu0 %v692
        %v756 = vpop.xlane.xlu0 %755
        %v757 = vmul.f32 %v694, 0.03125
        %v758 = vmul.f32 %v696, 0.03125
        %v759 = vmul.f32 %v698, 0.03125
        %v760 = vmul.f32 %v700, 0.03125
        %v761 = vmul.f32 %v702, 0.03125
        %v762 = vmul.f32 %v704, 0.03125
        %v763 = vmul.f32 %v706, 0.03125
        %v764 = vmul.f32 %v708, 0.03125
        %v765 = vmul.f32 %v710, 0.03125
        %v766 = vmul.f32 %v712, 0.03125
        %v767 = vmul.f32 %v714, 0.03125
        %v768 = vmul.f32 %v716, 0.03125
        %v769 = vmul.f32 %v718, 0.03125
        %v770 = vmul.f32 %v720, 0.03125
        %v771 = vmul.f32 %v722, 0.03125
        %v772 = vmul.f32 %v724, 0.03125
        %v773 = vmul.f32 %v726, 0.03125
        %v774 = vmul.f32 %v728, 0.03125
        %v775 = vmul.f32 %v730, 0.03125
        %v776 = vmul.f32 %v732, 0.03125
        %v777 = vmul.f32 %v734, 0.03125
        %v778 = vmul.f32 %v736, 0.03125
        %v779 = vmul.f32 %v738, 0.03125
        %v780 = vmul.f32 %v740, 0.03125
        %v781 = vmul.f32 %v742, 0.03125
        %v782 = vmul.f32 %v744, 0.03125
        %v783 = vmul.f32 %v746, 0.03125
        %v784 = vmul.f32 %v748, 0.03125
        %v785 = vmul.f32 %v750, 0.03125
        %v786 = vmul.f32 %v752, 0.03125
        %v787 = vmul.f32 %v754, 0.03125
        %v788 = vmul.f32 %v756, 0.03125
        %v789 = vadd.f32 %v757, 1e-05
        %v790 = vadd.f32 %v758, 1e-05
        %v791 = vadd.f32 %v759, 1e-05
        %v792 = vadd.f32 %v760, 1e-05
        %v793 = vadd.f32 %v761, 1e-05
        %v794 = vadd.f32 %v762, 1e-05
        %v795 = vadd.f32 %v763, 1e-05
        %v796 = vadd.f32 %v764, 1e-05
        %v797 = vadd.f32 %v765, 1e-05
        %v798 = vadd.f32 %v766, 1e-05
        %v799 = vadd.f32 %v767, 1e-05
        %v800 = vadd.f32 %v768, 1e-05
        %v801 = vadd.f32 %v769, 1e-05
        %v802 = vadd.f32 %v770, 1e-05
        %v803 = vadd.f32 %v771, 1e-05
        %v804 = vadd.f32 %v772, 1e-05
        %v805 = vadd.f32 %v773, 1e-05
        %v806 = vadd.f32 %v774, 1e-05
        %v807 = vadd.f32 %v775, 1e-05
        %v808 = vadd.f32 %v776, 1e-05
        %v809 = vadd.f32 %v777, 1e-05
        %v810 = vadd.f32 %v778, 1e-05
        %v811 = vadd.f32 %v779, 1e-05
        %v812 = vadd.f32 %v780, 1e-05
        %v813 = vadd.f32 %v781, 1e-05
        %v814 = vadd.f32 %v782, 1e-05
        %v815 = vadd.f32 %v783, 1e-05
        %v816 = vadd.f32 %v784, 1e-05
        %v817 = vadd.f32 %v785, 1e-05
        %v818 = vadd.f32 %v786, 1e-05
        %v819 = vadd.f32 %v787, 1e-05
        %v820 = vadd.f32 %v788, 1e-05
        %v821 = vrsqrt.pop %v789
        %v822 = vrsqrt.pop %v790
        %v823 = vrsqrt.pop %v791
        %v824 = vrsqrt.pop %v792
        %v825 = vrsqrt.pop %v793
        %v826 = vrsqrt.pop %v794
        %v827 = vrsqrt.pop %v795
        %v828 = vrsqrt.pop %v796
        %v829 = vrsqrt.pop %v797
        %v830 = vrsqrt.pop %v798
        %v831 = vrsqrt.pop %v799
        %v832 = vrsqrt.pop %v800
        %v833 = vrsqrt.pop %v801
        %v834 = vrsqrt.pop %v802
        %v835 = vrsqrt.pop %v803
        %v836 = vrsqrt.pop %v804
        %v837 = vrsqrt.pop %v805
        %v838 = vrsqrt.pop %v806
        %v839 = vrsqrt.pop %v807
        %v840 = vrsqrt.pop %v808
        %v841 = vrsqrt.pop %v809
        %v842 = vrsqrt.pop %v810
        %v843 = vrsqrt.pop %v811
        %v844 = vrsqrt.pop %v812
        %v845 = vrsqrt.pop %v813
        %v846 = vrsqrt.pop %v814
        %v847 = vrsqrt.pop %v815
        %v848 = vrsqrt.pop %v816
        %v849 = vrsqrt.pop %v817
        %v850 = vrsqrt.pop %v818
        %v851 = vrsqrt.pop %v819
        %v852 = vrsqrt.pop %v820
        %v853 = vmul.f32 %v629, %v821
        %v854 = vmul.f32 %v630, %v822
        %v855 = vmul.f32 %v631, %v823
        %v856 = vmul.f32 %v632, %v824
        %v857 = vmul.f32 %v633, %v825
        %v858 = vmul.f32 %v634, %v826
        %v859 = vmul.f32 %v635, %v827
        %v860 = vmul.f32 %v636, %v828
        %v861 = vmul.f32 %v637, %v829
        %v862 = vmul.f32 %v638, %v830
        %v863 = vmul.f32 %v639, %v831
        %v864 = vmul.f32 %v640, %v832
        %v865 = vmul.f32 %v641, %v833
        %v866 = vmul.f32 %v642, %v834
        %v867 = vmul.f32 %v643, %v835
        %v868 = vmul.f32 %v644, %v836
        %v869 = vmul.f32 %v645, %v837
        %v870 = vmul.f32 %v646, %v838
        %v871 = vmul.f32 %v647, %v839
        %v872 = vmul.f32 %v648, %v840
        %v873 = vmul.f32 %v649, %v841
        %v874 = vmul.f32 %v650, %v842
        %v875 = vmul.f32 %v651, %v843
        %v876 = vmul.f32 %v652, %v844
        %v877 = vmul.f32 %v653, %v845
        %v878 = vmul.f32 %v654, %v846
        %v879 = vmul.f32 %v655, %v847
        %v880 = vmul.f32 %v656, %v848
        %v881 = vmul.f32 %v657, %v849
        %v882 = vmul.f32 %v658, %v850
        %v883 = vmul.f32 %v659, %v851
        %v884 = vmul.f32 %v660, %v852
        %v885 = vlaneseq
        %v886 = vshrl.u32 %v885, 7
        %v887 = vsub.s32 1, %v886
        %v888 = vrot.slane %v275, %v887
        %v889 = vmul.f32 %v853, %v888
        %v890 = vmul.f32 %v854, %v888
        %v891 = vmul.f32 %v855, %v888
        %v892 = vmul.f32 %v856, %v888
        %v893 = vmul.f32 %v857, %v888
        %v894 = vmul.f32 %v858, %v888
        %v895 = vmul.f32 %v859, %v888
        %v896 = vmul.f32 %v860, %v888
        %v897 = vmul.f32 %v861, %v888
        %v898 = vmul.f32 %v862, %v888
        %v899 = vmul.f32 %v863, %v888
        %v900 = vmul.f32 %v864, %v888
        %v901 = vmul.f32 %v865, %v888
        %v902 = vmul.f32 %v866, %v888
        %v903 = vmul.f32 %v867, %v888
        %v904 = vmul.f32 %v868, %v888
        %v905 = vmul.f32 %v869, %v888
        %v906 = vmul.f32 %v870, %v888
        %v907 = vmul.f32 %v871, %v888
        %v908 = vmul.f32 %v872, %v888
        %v909 = vmul.f32 %v873, %v888
        %v910 = vmul.f32 %v874, %v888
        %v911 = vmul.f32 %v875, %v888
        %v912 = vmul.f32 %v876, %v888
        %v913 = vmul.f32 %v877, %v888
        %v914 = vmul.f32 %v878, %v888
        %v915 = vmul.f32 %v879, %v888
        %v916 = vmul.f32 %v880, %v888
        %v917 = vmul.f32 %v881, %v888
        %v918 = vmul.f32 %v882, %v888
        %v919 = vmul.f32 %v883, %v888
        %v920 = vmul.f32 %v884, %v888
        %v921 = vlaneseq
        %v922 = vshrl.u32 %v921, 7
        %v923 = vsub.s32 2, %v922
        %v924 = vrot.slane %v275, %v923
        %v925 = vadd.f32 %v889, %v924
        %v926 = vadd.f32 %v890, %v924
        %v927 = vadd.f32 %v891, %v924
        %v928 = vadd.f32 %v892, %v924
        %v929 = vadd.f32 %v893, %v924
        %v930 = vadd.f32 %v894, %v924
        %v931 = vadd.f32 %v895, %v924
        %v932 = vadd.f32 %v896, %v924
        %v933 = vadd.f32 %v897, %v924
        %v934 = vadd.f32 %v898, %v924
        %v935 = vadd.f32 %v899, %v924
        %v936 = vadd.f32 %v900, %v924
        %v937 = vadd.f32 %v901, %v924
        %v938 = vadd.f32 %v902, %v924
        %v939 = vadd.f32 %v903, %v924
        %v940 = vadd.f32 %v904, %v924
        %v941 = vadd.f32 %v905, %v924
        %v942 = vadd.f32 %v906, %v924
        %v943 = vadd.f32 %v907, %v924
        %v944 = vadd.f32 %v908, %v924
        %v945 = vadd.f32 %v909, %v924
        %v946 = vadd.f32 %v910, %v924
        %v947 = vadd.f32 %v911, %v924
        %v948 = vadd.f32 %v912, %v924
        %v949 = vadd.f32 %v913, %v924
        %v950 = vadd.f32 %v914, %v924
        %v951 = vadd.f32 %v915, %v924
        %v952 = vadd.f32 %v916, %v924
        %v953 = vadd.f32 %v917, %v924
        %v954 = vadd.f32 %v918, %v924
        %v955 = vadd.f32 %v919, %v924
        %v956 = vadd.f32 %v920, %v924
        %v957 = vmax.f32 %v925, 0.0
        %v958 = vmax.f32 %v926, 0.0
        %v959 = vmax.f32 %v927, 0.0
        %v960 = vmax.f32 %v928, 0.0
        %v961 = vmax.f32 %v929, 0.0
        %v962 = vmax.f32 %v930, 0.0
        %v963 = vmax.f32 %v931, 0.0
        %v964 = vmax.f32 %v932, 0.0
        %v965 = vmax.f32 %v933, 0.0
        %v966 = vmax.f32 %v934, 0.0
        %v967 = vmax.f32 %v935, 0.0
        %v968 = vmax.f32 %v936, 0.0
        %v969 = vmax.f32 %v937, 0.0
        %v970 = vmax.f32 %v938, 0.0
        %v971 = vmax.f32 %v939, 0.0
        %v972 = vmax.f32 %v940, 0.0
        %v973 = vmax.f32 %v941, 0.0
        %v974 = vmax.f32 %v942, 0.0
        %v975 = vmax.f32 %v943, 0.0
        %v976 = vmax.f32 %v944, 0.0
        %v977 = vmax.f32 %v945, 0.0
        %v978 = vmax.f32 %v946, 0.0
        %v979 = vmax.f32 %v947, 0.0
        %v980 = vmax.f32 %v948, 0.0
        %v981 = vmax.f32 %v949, 0.0
        %v982 = vmax.f32 %v950, 0.0
        %v983 = vmax.f32 %v951, 0.0
        %v984 = vmax.f32 %v952, 0.0
        %v985 = vmax.f32 %v953, 0.0
        %v986 = vmax.f32 %v954, 0.0
        %v987 = vmax.f32 %v955, 0.0
        %v988 = vmax.f32 %v956, 0.0
        %v989 = vpack.c.bf16 %v958, %v957
        %v990 = vpack.c.bf16 %v960, %v959
        %v991 = vpack.c.bf16 %v962, %v961
        %v992 = vpack.c.bf16 %v964, %v963
        %v993 = vpack.c.bf16 %v966, %v965
        %v994 = vpack.c.bf16 %v968, %v967
        %v995 = vpack.c.bf16 %v970, %v969
        %v996 = vpack.c.bf16 %v972, %v971
        %v997 = vpack.c.bf16 %v974, %v973
        %v998 = vpack.c.bf16 %v976, %v975
        %v999 = vpack.c.bf16 %v978, %v977
        %v1000 = vpack.c.bf16 %v980, %v979
        %v1001 = vpack.c.bf16 %v982, %v981
        %v1002 = vpack.c.bf16 %v984, %v983
        %v1003 = vpack.c.bf16 %v986, %v985
        %v1004 = vpack.c.bf16 %v988, %v987
        %v1005 = vld [vmem:[%s2] sm:$0xf]
        %v1006 = vld [vmem:[%s2 + $0x4] sm:$0xf]
        %v1007 = vld [vmem:[%s2 + $0x8] sm:$0xf]
        %v1008 = vld [vmem:[%s2 + $0xc] sm:$0xf]
        %v1009 = vld [vmem:[%s2 + $0x10] sm:$0xf]
        %v1010 = vld [vmem:[%s2 + $0x14] sm:$0xf]
        %v1011 = vld [vmem:[%s2 + $0x18] sm:$0xf]
        %v1012 = vld [vmem:[%s2 + $0x1c] sm:$0xf]
        %v1013 = vld [vmem:[%s2 + $0x20] sm:$0xf]
        %v1014 = vld [vmem:[%s2 + $0x24] sm:$0xf]
        %v1015 = vld [vmem:[%s2 + $0x28] sm:$0xf]
        %v1016 = vld [vmem:[%s2 + $0x2c] sm:$0xf]
        %v1017 = vld [vmem:[%s2 + $0x30] sm:$0xf]
        %v1018 = vld [vmem:[%s2 + $0x34] sm:$0xf]
        %v1019 = vld [vmem:[%s2 + $0x38] sm:$0xf]
        %v1020 = vld [vmem:[%s2 + $0x3c] sm:$0xf]
        %v1021 = vlaneseq
        %v1022 = vshrl.u32 %v1021, 7
        %v1023 = vsub.s32 3, %v1022
        %v1024 = vrot.slane %v275, %v1023
        %v1041 = vunpack.c.l.b16 %v1005
        %v1042 = vunpack.c.l.b16 %v1006
        %v1043 = vunpack.c.l.b16 %v1007
        %v1044 = vunpack.c.l.b16 %v1008
        %v1045 = vunpack.c.l.b16 %v1009
        %v1046 = vunpack.c.l.b16 %v1010
        %v1047 = vunpack.c.l.b16 %v1011
        %v1048 = vunpack.c.l.b16 %v1012
        %v1049 = vunpack.c.l.b16 %v1013
        %v1050 = vunpack.c.l.b16 %v1014
        %v1051 = vunpack.c.l.b16 %v1015
        %v1052 = vunpack.c.l.b16 %v1016
        %v1053 = vunpack.c.l.b16 %v1017
        %v1054 = vunpack.c.l.b16 %v1018
        %v1055 = vunpack.c.l.b16 %v1019
        %v1056 = vunpack.c.l.b16 %v1020
        %v1057 = vpack.c.b16 %v1042, %v1041
        %v1058 = vpack.c.b16 %v1044, %v1043
        %v1059 = vpack.c.b16 %v1046, %v1045
        %v1060 = vpack.c.b16 %v1048, %v1047
        %v1061 = vpack.c.b16 %v1050, %v1049
        %v1062 = vpack.c.b16 %v1052, %v1051
        %v1063 = vpack.c.b16 %v1054, %v1053
        %v1064 = vpack.c.b16 %v1056, %v1055
        %1073 = vmatprep.subr.bf16.mxu0 0
        %1074 = vmatpush1.bf16.msra.mxu0 %v1057
        %1075 = vmatprep.subr.bf16.mxu0 0
        %1076 = vmatpush1.bf16.msra.mxu0 %v1058
        %1077 = vmatprep.subr.bf16.mxu0 0
        %1078 = vmatpush1.bf16.msra.mxu0 %v1059
        %1079 = vmatprep.subr.bf16.mxu0 0
        %1080 = vmatpush1.bf16.msra.mxu0 %v1060
        %1081 = vmatprep.subr.bf16.mxu0 0
        %1082 = vmatpush1.bf16.msra.mxu0 %v1061
        %1083 = vmatprep.subr.bf16.mxu0 0
        %1084 = vmatpush1.bf16.msra.mxu0 %v1062
        %1085 = vmatprep.subr.bf16.mxu0 0
        %1086 = vmatpush1.bf16.msra.mxu0 %v1063
        %1087 = vmatprep.subr.bf16.mxu0 0
        %1088 = vmatpush1.bf16.msra.mxu0 %v1064
        %1089 = vmatprep.subr.bf16.mxu0 0
        %1090 = vmatpush1.bf16.msra.mxu0 0
        %1091 = vmatprep.subr.bf16.mxu0 0
        %1092 = vmatpush1.bf16.msra.mxu0 0
        %1093 = vmatprep.subr.bf16.mxu0 0
        %1094 = vmatpush1.bf16.msra.mxu0 0
        %1095 = vmatprep.subr.bf16.mxu0 0
        %1096 = vmatpush1.bf16.msra.mxu0 0
        %1097 = vmatprep.subr.bf16.mxu0 0
        %1098 = vmatpush1.bf16.msra.mxu0 0
        %1099 = vmatprep.subr.bf16.mxu0 0
        %1100 = vmatpush1.bf16.msra.mxu0 0
        %1101 = vmatprep.subr.bf16.mxu0 0
        %1102 = vmatpush1.bf16.msra.mxu0 0
        %1103 = vmatprep.subr.bf16.mxu0 0
        %1104 = vmatpush1.bf16.msra.mxu0 0
        %1105 = vmatprep.mubr.bf16.mxu0 0
        %1106 = vmatmul.mubr.bf16.gmra.mrb[0].mxu0 %v989
        %v1107 = vpop.f32.mrb[0].mxu0
        %v1108 = vadd.f32 %v1024, %v1107
        %v1109 = vpop.f32.mrb[0].mxu0
        %v1110 = vpop.f32.mrb[0].mxu0
        %v1111 = vadd.f32 %v1024, %v1110
        %v1112 = vpop.f32.mrb[0].mxu0
        %1113 = vmatprep.mubr.bf16.mxu0 0
        %1114 = vmatmul.mubr.bf16.gmra.mrb[0].mxu0 %v990
        %v1115 = vpop.f32.mrb[0].mxu0
        %v1116 = vadd.f32 %v1024, %v1115
        %v1117 = vpop.f32.mrb[0].mxu0
        %v1118 = vpop.f32.mrb[0].mxu0
        %v1119 = vadd.f32 %v1024, %v1118
        %v1120 = vpop.f32.mrb[0].mxu0
        %1121 = vmatprep.mubr.bf16.mxu0 0
        %1122 = vmatmul.mubr.bf16.gmra.mrb[0].mxu0 %v991
        %v1123 = vpop.f32.mrb[0].mxu0
        %v1124 = vadd.f32 %v1024, %v1123
        %v1125 = vpop.f32.mrb[0].mxu0
        %v1126 = vpop.f32.mrb[0].mxu0
        %v1127 = vadd.f32 %v1024, %v1126
        %v1128 = vpop.f32.mrb[0].mxu0
        %1129 = vmatprep.mubr.bf16.mxu0 0
        %1130 = vmatmul.mubr.bf16.gmra.mrb[0].mxu0 %v992
        %v1131 = vpop.f32.mrb[0].mxu0
        %v1132 = vadd.f32 %v1024, %v1131
        %v1133 = vpop.f32.mrb[0].mxu0
        %v1134 = vpop.f32.mrb[0].mxu0
        %v1135 = vadd.f32 %v1024, %v1134
        %v1136 = vpop.f32.mrb[0].mxu0
        %1137 = vmatprep.mubr.bf16.mxu0 0
        %1138 = vmatmul.mubr.bf16.gmra.mrb[0].mxu0 %v993
        %v1139 = vpop.f32.mrb[0].mxu0
        %v1140 = vadd.f32 %v1024, %v1139
        %v1141 = vpop.f32.mrb[0].mxu0
        %v1142 = vpop.f32.mrb[0].mxu0
        %v1143 = vadd.f32 %v1024, %v1142
        %v1144 = vpop.f32.mrb[0].mxu0
        %1145 = vmatprep.mubr.bf16.mxu0 0
        %1146 = vmatmul.mubr.bf16.gmra.mrb[0].mxu0 %v994
        %v1147 = vpop.f32.mrb[0].mxu0
        %v1148 = vadd.f32 %v1024, %v1147
        %v1149 = vpop.f32.mrb[0].mxu0
        %v1150 = vpop.f32.mrb[0].mxu0
        %v1151 = vadd.f32 %v1024, %v1150
        %v1152 = vpop.f32.mrb[0].mxu0
        %1153 = vmatprep.mubr.bf16.mxu0 0
        %1154 = vmatmul.mubr.bf16.gmra.mrb[0].mxu0 %v995
        %v1155 = vpop.f32.mrb[0].mxu0
        %v1156 = vadd.f32 %v1024, %v1155
        %v1157 = vpop.f32.mrb[0].mxu0
        %v1158 = vpop.f32.mrb[0].mxu0
        %v1159 = vadd.f32 %v1024, %v1158
        %v1160 = vpop.f32.mrb[0].mxu0
        %1161 = vmatprep.mubr.bf16.mxu0 0
        %1162 = vmatmul.mubr.bf16.gmra.mrb[0].mxu0 %v996
        %v1163 = vpop.f32.mrb[0].mxu0
        %v1164 = vadd.f32 %v1024, %v1163
        %v1165 = vpop.f32.mrb[0].mxu0
        %v1166 = vpop.f32.mrb[0].mxu0
        %v1167 = vadd.f32 %v1024, %v1166
        %v1168 = vpop.f32.mrb[0].mxu0
        %1169 = vmatprep.mubr.bf16.mxu0 0
        %1170 = vmatmul.mubr.bf16.gmra.mrb[0].mxu0 %v997
        %v1171 = vpop.f32.mrb[0].mxu0
        %v1172 = vadd.f32 %v1024, %v1171
        %v1173 = vpop.f32.mrb[0].mxu0
        %v1174 = vpop.f32.mrb[0].mxu0
        %v1175 = vadd.f32 %v1024, %v1174
        %v1176 = vpop.f32.mrb[0].mxu0
        %1177 = vmatprep.mubr.bf16.mxu0 0
        %1178 = vmatmul.mubr.bf16.gmra.mrb[0].mxu0 %v998
        %v1179 = vpop.f32.mrb[0].mxu0
        %v1180 = vadd.f32 %v1024, %v1179
        %v1181 = vpop.f32.mrb[0].mxu0
        %v1182 = vpop.f32.mrb[0].mxu0
        %v1183 = vadd.f32 %v1024, %v1182
        %v1184 = vpop.f32.mrb[0].mxu0
        %1185 = vmatprep.mubr.bf16.mxu0 0
        %1186 = vmatmul.mubr.bf16.gmra.mrb[0].mxu0 %v999
        %v1187 = vpop.f32.mrb[0].mxu0
        %v1188 = vadd.f32 %v1024, %v1187
        %v1189 = vpop.f32.mrb[0].mxu0
        %v1190 = vpop.f32.mrb[0].mxu0
        %v1191 = vadd.f32 %v1024, %v1190
        %v1192 = vpop.f32.mrb[0].mxu0
        %1193 = vmatprep.mubr.bf16.mxu0 0
        %1194 = vmatmul.mubr.bf16.gmra.mrb[0].mxu0 %v1000
        %v1195 = vpop.f32.mrb[0].mxu0
        %v1196 = vadd.f32 %v1024, %v1195
        %v1197 = vpop.f32.mrb[0].mxu0
        %v1198 = vpop.f32.mrb[0].mxu0
        %v1199 = vadd.f32 %v1024, %v1198
        %v1200 = vpop.f32.mrb[0].mxu0
        %1201 = vmatprep.mubr.bf16.mxu0 0
        %1202 = vmatmul.mubr.bf16.gmra.mrb[0].mxu0 %v1001
        %v1203 = vpop.f32.mrb[0].mxu0
        %v1204 = vadd.f32 %v1024, %v1203
        %v1205 = vpop.f32.mrb[0].mxu0
        %v1206 = vpop.f32.mrb[0].mxu0
        %v1207 = vadd.f32 %v1024, %v1206
        %v1208 = vpop.f32.mrb[0].mxu0
        %1209 = vmatprep.mubr.bf16.mxu0 0
        %1210 = vmatmul.mubr.bf16.gmra.mrb[0].mxu0 %v1002
        %v1211 = vpop.f32.mrb[0].mxu0
        %v1212 = vadd.f32 %v1024, %v1211
        %v1213 = vpop.f32.mrb[0].mxu0
        %v1214 = vpop.f32.mrb[0].mxu0
        %v1215 = vadd.f32 %v1024, %v1214
        %v1216 = vpop.f32.mrb[0].mxu0
        %1217 = vmatprep.mubr.bf16.mxu0 0
        %1218 = vmatmul.mubr.bf16.gmra.mrb[0].mxu0 %v1003
        %v1219 = vpop.f32.mrb[0].mxu0
        %v1220 = vadd.f32 %v1024, %v1219
        %v1221 = vpop.f32.mrb[0].mxu0
        %v1222 = vpop.f32.mrb[0].mxu0
        %v1223 = vadd.f32 %v1024, %v1222
        %v1224 = vpop.f32.mrb[0].mxu0
        %1225 = vmatprep.mubr.bf16.mxu0 0
        %1226 = vmatmul.mubr.bf16.gmra.mrb[0].mxu0 %v1004
        %v1227 = vpop.f32.mrb[0].mxu0
        %v1228 = vadd.f32 %v1024, %v1227
        %v1229 = vpop.f32.mrb[0].mxu0
        %v1230 = vpop.f32.mrb[0].mxu0
        %v1231 = vadd.f32 %v1024, %v1230
        %v1232 = vpop.f32.mrb[0].mxu0
        %1233 = vdwg.mxu0
        %1234 = vadd.xlane.f32.xlu0 %v1108
        %v1235 = vpop.xlane.xlu0 %1234
        %1236 = vadd.xlane.f32.xlu0 %v1111
        %v1237 = vpop.xlane.xlu0 %1236
        %1238 = vadd.xlane.f32.xlu0 %v1116
        %v1239 = vpop.xlane.xlu0 %1238
        %1240 = vadd.xlane.f32.xlu0 %v1119
        %v1241 = vpop.xlane.xlu0 %1240
        %1242 = vadd.xlane.f32.xlu0 %v1124
        %v1243 = vpop.xlane.xlu0 %1242
        %1244 = vadd.xlane.f32.xlu0 %v1127
        %v1245 = vpop.xlane.xlu0 %1244
        %1246 = vadd.xlane.f32.xlu0 %v1132
        %v1247 = vpop.xlane.xlu0 %1246
        %1248 = vadd.xlane.f32.xlu0 %v1135
        %v1249 = vpop.xlane.xlu0 %1248
        %1250 = vadd.xlane.f32.xlu0 %v1140
        %v1251 = vpop.xlane.xlu0 %1250
        %1252 = vadd.xlane.f32.xlu0 %v1143
        %v1253 = vpop.xlane.xlu0 %1252
        %1254 = vadd.xlane.f32.xlu0 %v1148
        %v1255 = vpop.xlane.xlu0 %1254
        %1256 = vadd.xlane.f32.xlu0 %v1151
        %v1257 = vpop.xlane.xlu0 %1256
        %1258 = vadd.xlane.f32.xlu0 %v1156
        %v1259 = vpop.xlane.xlu0 %1258
        %1260 = vadd.xlane.f32.xlu0 %v1159
        %v1261 = vpop.xlane.xlu0 %1260
        %1262 = vadd.xlane.f32.xlu0 %v1164
        %v1263 = vpop.xlane.xlu0 %1262
        %1264 = vadd.xlane.f32.xlu0 %v1167
        %v1265 = vpop.xlane.xlu0 %1264
        %1266 = vadd.xlane.f32.xlu0 %v1172
        %v1267 = vpop.xlane.xlu0 %1266
        %1268 = vadd.xlane.f32.xlu0 %v1175
        %v1269 = vpop.xlane.xlu0 %1268
        %1270 = vadd.xlane.f32.xlu0 %v1180
        %v1271 = vpop.xlane.xlu0 %1270
        %1272 = vadd.xlane.f32.xlu0 %v1183
        %v1273 = vpop.xlane.xlu0 %1272
        %1274 = vadd.xlane.f32.xlu0 %v1188
        %v1275 = vpop.xlane.xlu0 %1274
        %1276 = vadd.xlane.f32.xlu0 %v1191
        %v1277 = vpop.xlane.xlu0 %1276
        %1278 = vadd.xlane.f32.xlu0 %v1196
        %v1279 = vpop.xlane.xlu0 %1278
        %1280 = vadd.xlane.f32.xlu0 %v1199
        %v1281 = vpop.xlane.xlu0 %1280
        %1282 = vadd.xlane.f32.xlu0 %v1204
        %v1283 = vpop.xlane.xlu0 %1282
        %1284 = vadd.xlane.f32.xlu0 %v1207
        %v1285 = vpop.xlane.xlu0 %1284
        %1286 = vadd.xlane.f32.xlu0 %v1212
        %v1287 = vpop.xlane.xlu0 %1286
        %1288 = vadd.xlane.f32.xlu0 %v1215
        %v1289 = vpop.xlane.xlu0 %1288
        %1290 = vadd.xlane.f32.xlu0 %v1220
        %v1291 = vpop.xlane.xlu0 %1290
        %1292 = vadd.xlane.f32.xlu0 %v1223
        %v1293 = vpop.xlane.xlu0 %1292
        %1294 = vadd.xlane.f32.xlu0 %v1228
        %v1295 = vpop.xlane.xlu0 %1294
        %1296 = vadd.xlane.f32.xlu0 %v1231
        %v1297 = vpop.xlane.xlu0 %1296
        %v1298 = vmul.f32 %v1235, 0.03125
        %v1299 = vmul.f32 %v1237, 0.03125
        %v1300 = vmul.f32 %v1239, 0.03125
        %v1301 = vmul.f32 %v1241, 0.03125
        %v1302 = vmul.f32 %v1243, 0.03125
        %v1303 = vmul.f32 %v1245, 0.03125
        %v1304 = vmul.f32 %v1247, 0.03125
        %v1305 = vmul.f32 %v1249, 0.03125
        %v1306 = vmul.f32 %v1251, 0.03125
        %v1307 = vmul.f32 %v1253, 0.03125
        %v1308 = vmul.f32 %v1255, 0.03125
        %v1309 = vmul.f32 %v1257, 0.03125
        %v1310 = vmul.f32 %v1259, 0.03125
        %v1311 = vmul.f32 %v1261, 0.03125
        %v1312 = vmul.f32 %v1263, 0.03125
        %v1313 = vmul.f32 %v1265, 0.03125
        %v1314 = vmul.f32 %v1267, 0.03125
        %v1315 = vmul.f32 %v1269, 0.03125
        %v1316 = vmul.f32 %v1271, 0.03125
        %v1317 = vmul.f32 %v1273, 0.03125
        %v1318 = vmul.f32 %v1275, 0.03125
        %v1319 = vmul.f32 %v1277, 0.03125
        %v1320 = vmul.f32 %v1279, 0.03125
        %v1321 = vmul.f32 %v1281, 0.03125
        %v1322 = vmul.f32 %v1283, 0.03125
        %v1323 = vmul.f32 %v1285, 0.03125
        %v1324 = vmul.f32 %v1287, 0.03125
        %v1325 = vmul.f32 %v1289, 0.03125
        %v1326 = vmul.f32 %v1291, 0.03125
        %v1327 = vmul.f32 %v1293, 0.03125
        %v1328 = vmul.f32 %v1295, 0.03125
        %v1329 = vmul.f32 %v1297, 0.03125
        %v1330 = vsub.f32 %v1108, %v1298
        %v1331 = vsub.f32 %v1111, %v1299
        %v1332 = vsub.f32 %v1116, %v1300
        %v1333 = vsub.f32 %v1119, %v1301
        %v1334 = vsub.f32 %v1124, %v1302
        %v1335 = vsub.f32 %v1127, %v1303
        %v1336 = vsub.f32 %v1132, %v1304
        %v1337 = vsub.f32 %v1135, %v1305
        %v1338 = vsub.f32 %v1140, %v1306
        %v1339 = vsub.f32 %v1143, %v1307
        %v1340 = vsub.f32 %v1148, %v1308
        %v1341 = vsub.f32 %v1151, %v1309
        %v1342 = vsub.f32 %v1156, %v1310
        %v1343 = vsub.f32 %v1159, %v1311
        %v1344 = vsub.f32 %v1164, %v1312
        %v1345 = vsub.f32 %v1167, %v1313
        %v1346 = vsub.f32 %v1172, %v1314
        %v1347 = vsub.f32 %v1175, %v1315
        %v1348 = vsub.f32 %v1180, %v1316
        %v1349 = vsub.f32 %v1183, %v1317
        %v1350 = vsub.f32 %v1188, %v1318
        %v1351 = vsub.f32 %v1191, %v1319
        %v1352 = vsub.f32 %v1196, %v1320
        %v1353 = vsub.f32 %v1199, %v1321
        %v1354 = vsub.f32 %v1204, %v1322
        %v1355 = vsub.f32 %v1207, %v1323
        %v1356 = vsub.f32 %v1212, %v1324
        %v1357 = vsub.f32 %v1215, %v1325
        %v1358 = vsub.f32 %v1220, %v1326
        %v1359 = vsub.f32 %v1223, %v1327
        %v1360 = vsub.f32 %v1228, %v1328
        %v1361 = vsub.f32 %v1231, %v1329
        %v1362 = vsel %vm628, %v1330, 0.0
        %v1363 = vsel %vm628, %v1331, 0.0
        %v1364 = vsel %vm628, %v1332, 0.0
        %v1365 = vsel %vm628, %v1333, 0.0
        %v1366 = vsel %vm628, %v1334, 0.0
        %v1367 = vsel %vm628, %v1335, 0.0
        %v1368 = vsel %vm628, %v1336, 0.0
        %v1369 = vsel %vm628, %v1337, 0.0
        %v1370 = vsel %vm628, %v1338, 0.0
        %v1371 = vsel %vm628, %v1339, 0.0
        %v1372 = vsel %vm628, %v1340, 0.0
        %v1373 = vsel %vm628, %v1341, 0.0
        %v1374 = vsel %vm628, %v1342, 0.0
        %v1375 = vsel %vm628, %v1343, 0.0
        %v1376 = vsel %vm628, %v1344, 0.0
        %v1377 = vsel %vm628, %v1345, 0.0
        %v1378 = vsel %vm628, %v1346, 0.0
        %v1379 = vsel %vm628, %v1347, 0.0
        %v1380 = vsel %vm628, %v1348, 0.0
        %v1381 = vsel %vm628, %v1349, 0.0
        %v1382 = vsel %vm628, %v1350, 0.0
        %v1383 = vsel %vm628, %v1351, 0.0
        %v1384 = vsel %vm628, %v1352, 0.0
        %v1385 = vsel %vm628, %v1353, 0.0
        %v1386 = vsel %vm628, %v1354, 0.0
        %v1387 = vsel %vm628, %v1355, 0.0
        %v1388 = vsel %vm628, %v1356, 0.0
        %v1389 = vsel %vm628, %v1357, 0.0
        %v1390 = vsel %vm628, %v1358, 0.0
        %v1391 = vsel %vm628, %v1359, 0.0
        %v1392 = vsel %vm628, %v1360, 0.0
        %v1393 = vsel %vm628, %v1361, 0.0
        %v1394 = vmul.f32 %v1362, %v1362
        %v1395 = vmul.f32 %v1363, %v1363
        %v1396 = vmul.f32 %v1364, %v1364
        %v1397 = vmul.f32 %v1365, %v1365
        %v1398 = vmul.f32 %v1366, %v1366
        %v1399 = vmul.f32 %v1367, %v1367
        %v1400 = vmul.f32 %v1368, %v1368
        %v1401 = vmul.f32 %v1369, %v1369
        %v1402 = vmul.f32 %v1370, %v1370
        %v1403 = vmul.f32 %v1371, %v1371
        %v1404 = vmul.f32 %v1372, %v1372
        %v1405 = vmul.f32 %v1373, %v1373
        %v1406 = vmul.f32 %v1374, %v1374
        %v1407 = vmul.f32 %v1375, %v1375
        %v1408 = vmul.f32 %v1376, %v1376
        %v1409 = vmul.f32 %v1377, %v1377
        %v1410 = vmul.f32 %v1378, %v1378
        %v1411 = vmul.f32 %v1379, %v1379
        %v1412 = vmul.f32 %v1380, %v1380
        %v1413 = vmul.f32 %v1381, %v1381
        %v1414 = vmul.f32 %v1382, %v1382
        %v1415 = vmul.f32 %v1383, %v1383
        %v1416 = vmul.f32 %v1384, %v1384
        %v1417 = vmul.f32 %v1385, %v1385
        %v1418 = vmul.f32 %v1386, %v1386
        %v1419 = vmul.f32 %v1387, %v1387
        %v1420 = vmul.f32 %v1388, %v1388
        %v1421 = vmul.f32 %v1389, %v1389
        %v1422 = vmul.f32 %v1390, %v1390
        %v1423 = vmul.f32 %v1391, %v1391
        %v1424 = vmul.f32 %v1392, %v1392
        %v1425 = vmul.f32 %v1393, %v1393
        %1426 = vadd.xlane.f32.xlu0 %v1394
        %v1427 = vpop.xlane.xlu0 %1426
        %1428 = vadd.xlane.f32.xlu0 %v1395
        %v1429 = vpop.xlane.xlu0 %1428
        %1430 = vadd.xlane.f32.xlu0 %v1396
        %v1431 = vpop.xlane.xlu0 %1430
        %1432 = vadd.xlane.f32.xlu0 %v1397
        %v1433 = vpop.xlane.xlu0 %1432
        %1434 = vadd.xlane.f32.xlu0 %v1398
        %v1435 = vpop.xlane.xlu0 %1434
        %1436 = vadd.xlane.f32.xlu0 %v1399
        %v1437 = vpop.xlane.xlu0 %1436
        %1438 = vadd.xlane.f32.xlu0 %v1400
        %v1439 = vpop.xlane.xlu0 %1438
        %1440 = vadd.xlane.f32.xlu0 %v1401
        %v1441 = vpop.xlane.xlu0 %1440
        %1442 = vadd.xlane.f32.xlu0 %v1402
        %v1443 = vpop.xlane.xlu0 %1442
        %1444 = vadd.xlane.f32.xlu0 %v1403
        %v1445 = vpop.xlane.xlu0 %1444
        %1446 = vadd.xlane.f32.xlu0 %v1404
        %v1447 = vpop.xlane.xlu0 %1446
        %1448 = vadd.xlane.f32.xlu0 %v1405
        %v1449 = vpop.xlane.xlu0 %1448
        %1450 = vadd.xlane.f32.xlu0 %v1406
        %v1451 = vpop.xlane.xlu0 %1450
        %1452 = vadd.xlane.f32.xlu0 %v1407
        %v1453 = vpop.xlane.xlu0 %1452
        %1454 = vadd.xlane.f32.xlu0 %v1408
        %v1455 = vpop.xlane.xlu0 %1454
        %1456 = vadd.xlane.f32.xlu0 %v1409
        %v1457 = vpop.xlane.xlu0 %1456
        %1458 = vadd.xlane.f32.xlu0 %v1410
        %v1459 = vpop.xlane.xlu0 %1458
        %1460 = vadd.xlane.f32.xlu0 %v1411
        %v1461 = vpop.xlane.xlu0 %1460
        %1462 = vadd.xlane.f32.xlu0 %v1412
        %v1463 = vpop.xlane.xlu0 %1462
        %1464 = vadd.xlane.f32.xlu0 %v1413
        %v1465 = vpop.xlane.xlu0 %1464
        %1466 = vadd.xlane.f32.xlu0 %v1414
        %v1467 = vpop.xlane.xlu0 %1466
        %1468 = vadd.xlane.f32.xlu0 %v1415
        %v1469 = vpop.xlane.xlu0 %1468
        %1470 = vadd.xlane.f32.xlu0 %v1416
        %v1471 = vpop.xlane.xlu0 %1470
        %1472 = vadd.xlane.f32.xlu0 %v1417
        %v1473 = vpop.xlane.xlu0 %1472
        %1474 = vadd.xlane.f32.xlu0 %v1418
        %v1475 = vpop.xlane.xlu0 %1474
        %1476 = vadd.xlane.f32.xlu0 %v1419
        %v1477 = vpop.xlane.xlu0 %1476
        %1478 = vadd.xlane.f32.xlu0 %v1420
        %v1479 = vpop.xlane.xlu0 %1478
        %1480 = vadd.xlane.f32.xlu0 %v1421
        %v1481 = vpop.xlane.xlu0 %1480
        %1482 = vadd.xlane.f32.xlu0 %v1422
        %v1483 = vpop.xlane.xlu0 %1482
        %1484 = vadd.xlane.f32.xlu0 %v1423
        %v1485 = vpop.xlane.xlu0 %1484
        %1486 = vadd.xlane.f32.xlu0 %v1424
        %v1487 = vpop.xlane.xlu0 %1486
        %1488 = vadd.xlane.f32.xlu0 %v1425
        %v1489 = vpop.xlane.xlu0 %1488
        %v1490 = vmul.f32 %v1427, 0.03125
        %v1491 = vmul.f32 %v1429, 0.03125
        %v1492 = vmul.f32 %v1431, 0.03125
        %v1493 = vmul.f32 %v1433, 0.03125
        %v1494 = vmul.f32 %v1435, 0.03125
        %v1495 = vmul.f32 %v1437, 0.03125
        %v1496 = vmul.f32 %v1439, 0.03125
        %v1497 = vmul.f32 %v1441, 0.03125
        %v1498 = vmul.f32 %v1443, 0.03125
        %v1499 = vmul.f32 %v1445, 0.03125
        %v1500 = vmul.f32 %v1447, 0.03125
        %v1501 = vmul.f32 %v1449, 0.03125
        %v1502 = vmul.f32 %v1451, 0.03125
        %v1503 = vmul.f32 %v1453, 0.03125
        %v1504 = vmul.f32 %v1455, 0.03125
        %v1505 = vmul.f32 %v1457, 0.03125
        %v1506 = vmul.f32 %v1459, 0.03125
        %v1507 = vmul.f32 %v1461, 0.03125
        %v1508 = vmul.f32 %v1463, 0.03125
        %v1509 = vmul.f32 %v1465, 0.03125
        %v1510 = vmul.f32 %v1467, 0.03125
        %v1511 = vmul.f32 %v1469, 0.03125
        %v1512 = vmul.f32 %v1471, 0.03125
        %v1513 = vmul.f32 %v1473, 0.03125
        %v1514 = vmul.f32 %v1475, 0.03125
        %v1515 = vmul.f32 %v1477, 0.03125
        %v1516 = vmul.f32 %v1479, 0.03125
        %v1517 = vmul.f32 %v1481, 0.03125
        %v1518 = vmul.f32 %v1483, 0.03125
        %v1519 = vmul.f32 %v1485, 0.03125
        %v1520 = vmul.f32 %v1487, 0.03125
        %v1521 = vmul.f32 %v1489, 0.03125
        %v1522 = vadd.f32 %v1490, 1e-05
        %v1523 = vadd.f32 %v1491, 1e-05
        %v1524 = vadd.f32 %v1492, 1e-05
        %v1525 = vadd.f32 %v1493, 1e-05
        %v1526 = vadd.f32 %v1494, 1e-05
        %v1527 = vadd.f32 %v1495, 1e-05
        %v1528 = vadd.f32 %v1496, 1e-05
        %v1529 = vadd.f32 %v1497, 1e-05
        %v1530 = vadd.f32 %v1498, 1e-05
        %v1531 = vadd.f32 %v1499, 1e-05
        %v1532 = vadd.f32 %v1500, 1e-05
        %v1533 = vadd.f32 %v1501, 1e-05
        %v1534 = vadd.f32 %v1502, 1e-05
        %v1535 = vadd.f32 %v1503, 1e-05
        %v1536 = vadd.f32 %v1504, 1e-05
        %v1537 = vadd.f32 %v1505, 1e-05
        %v1538 = vadd.f32 %v1506, 1e-05
        %v1539 = vadd.f32 %v1507, 1e-05
        %v1540 = vadd.f32 %v1508, 1e-05
        %v1541 = vadd.f32 %v1509, 1e-05
        %v1542 = vadd.f32 %v1510, 1e-05
        %v1543 = vadd.f32 %v1511, 1e-05
        %v1544 = vadd.f32 %v1512, 1e-05
        %v1545 = vadd.f32 %v1513, 1e-05
        %v1546 = vadd.f32 %v1514, 1e-05
        %v1547 = vadd.f32 %v1515, 1e-05
        %v1548 = vadd.f32 %v1516, 1e-05
        %v1549 = vadd.f32 %v1517, 1e-05
        %v1550 = vadd.f32 %v1518, 1e-05
        %v1551 = vadd.f32 %v1519, 1e-05
        %v1552 = vadd.f32 %v1520, 1e-05
        %v1553 = vadd.f32 %v1521, 1e-05
        %v1554 = vrsqrt.pop %v1522
        %v1555 = vrsqrt.pop %v1523
        %v1556 = vrsqrt.pop %v1524
        %v1557 = vrsqrt.pop %v1525
        %v1558 = vrsqrt.pop %v1526
        %v1559 = vrsqrt.pop %v1527
        %v1560 = vrsqrt.pop %v1528
        %v1561 = vrsqrt.pop %v1529
        %v1562 = vrsqrt.pop %v1530
        %v1563 = vrsqrt.pop %v1531
        %v1564 = vrsqrt.pop %v1532
        %v1565 = vrsqrt.pop %v1533
        %v1566 = vrsqrt.pop %v1534
        %v1567 = vrsqrt.pop %v1535
        %v1568 = vrsqrt.pop %v1536
        %v1569 = vrsqrt.pop %v1537
        %v1570 = vrsqrt.pop %v1538
        %v1571 = vrsqrt.pop %v1539
        %v1572 = vrsqrt.pop %v1540
        %v1573 = vrsqrt.pop %v1541
        %v1574 = vrsqrt.pop %v1542
        %v1575 = vrsqrt.pop %v1543
        %v1576 = vrsqrt.pop %v1544
        %v1577 = vrsqrt.pop %v1545
        %v1578 = vrsqrt.pop %v1546
        %v1579 = vrsqrt.pop %v1547
        %v1580 = vrsqrt.pop %v1548
        %v1581 = vrsqrt.pop %v1549
        %v1582 = vrsqrt.pop %v1550
        %v1583 = vrsqrt.pop %v1551
        %v1584 = vrsqrt.pop %v1552
        %v1585 = vrsqrt.pop %v1553
        %v1586 = vmul.f32 %v1362, %v1554
        %v1587 = vmul.f32 %v1363, %v1555
        %v1588 = vmul.f32 %v1364, %v1556
        %v1589 = vmul.f32 %v1365, %v1557
        %v1590 = vmul.f32 %v1366, %v1558
        %v1591 = vmul.f32 %v1367, %v1559
        %v1592 = vmul.f32 %v1368, %v1560
        %v1593 = vmul.f32 %v1369, %v1561
        %v1594 = vmul.f32 %v1370, %v1562
        %v1595 = vmul.f32 %v1371, %v1563
        %v1596 = vmul.f32 %v1372, %v1564
        %v1597 = vmul.f32 %v1373, %v1565
        %v1598 = vmul.f32 %v1374, %v1566
        %v1599 = vmul.f32 %v1375, %v1567
        %v1600 = vmul.f32 %v1376, %v1568
        %v1601 = vmul.f32 %v1377, %v1569
        %v1602 = vmul.f32 %v1378, %v1570
        %v1603 = vmul.f32 %v1379, %v1571
        %v1604 = vmul.f32 %v1380, %v1572
        %v1605 = vmul.f32 %v1381, %v1573
        %v1606 = vmul.f32 %v1382, %v1574
        %v1607 = vmul.f32 %v1383, %v1575
        %v1608 = vmul.f32 %v1384, %v1576
        %v1609 = vmul.f32 %v1385, %v1577
        %v1610 = vmul.f32 %v1386, %v1578
        %v1611 = vmul.f32 %v1387, %v1579
        %v1612 = vmul.f32 %v1388, %v1580
        %v1613 = vmul.f32 %v1389, %v1581
        %v1614 = vmul.f32 %v1390, %v1582
        %v1615 = vmul.f32 %v1391, %v1583
        %v1616 = vmul.f32 %v1392, %v1584
        %v1617 = vmul.f32 %v1393, %v1585
        %v1618 = vlaneseq
        %v1619 = vshrl.u32 %v1618, 7
        %v1620 = vsub.s32 4, %v1619
        %v1621 = vrot.slane %v275, %v1620
        %v1622 = vmul.f32 %v1586, %v1621
        %v1623 = vmul.f32 %v1587, %v1621
        %v1624 = vmul.f32 %v1588, %v1621
        %v1625 = vmul.f32 %v1589, %v1621
        %v1626 = vmul.f32 %v1590, %v1621
        %v1627 = vmul.f32 %v1591, %v1621
        %v1628 = vmul.f32 %v1592, %v1621
        %v1629 = vmul.f32 %v1593, %v1621
        %v1630 = vmul.f32 %v1594, %v1621
        %v1631 = vmul.f32 %v1595, %v1621
        %v1632 = vmul.f32 %v1596, %v1621
        %v1633 = vmul.f32 %v1597, %v1621
        %v1634 = vmul.f32 %v1598, %v1621
        %v1635 = vmul.f32 %v1599, %v1621
        %v1636 = vmul.f32 %v1600, %v1621
        %v1637 = vmul.f32 %v1601, %v1621
        %v1638 = vmul.f32 %v1602, %v1621
        %v1639 = vmul.f32 %v1603, %v1621
        %v1640 = vmul.f32 %v1604, %v1621
        %v1641 = vmul.f32 %v1605, %v1621
        %v1642 = vmul.f32 %v1606, %v1621
        %v1643 = vmul.f32 %v1607, %v1621
        %v1644 = vmul.f32 %v1608, %v1621
        %v1645 = vmul.f32 %v1609, %v1621
        %v1646 = vmul.f32 %v1610, %v1621
        %v1647 = vmul.f32 %v1611, %v1621
        %v1648 = vmul.f32 %v1612, %v1621
        %v1649 = vmul.f32 %v1613, %v1621
        %v1650 = vmul.f32 %v1614, %v1621
        %v1651 = vmul.f32 %v1615, %v1621
        %v1652 = vmul.f32 %v1616, %v1621
        %v1653 = vmul.f32 %v1617, %v1621
        %v1654 = vlaneseq
        %v1655 = vshrl.u32 %v1654, 7
        %v1656 = vsub.s32 5, %v1655
        %v1657 = vrot.slane %v275, %v1656
        %v1658 = vadd.f32 %v1622, %v1657
        %v1659 = vadd.f32 %v1623, %v1657
        %v1660 = vadd.f32 %v1624, %v1657
        %v1661 = vadd.f32 %v1625, %v1657
        %v1662 = vadd.f32 %v1626, %v1657
        %v1663 = vadd.f32 %v1627, %v1657
        %v1664 = vadd.f32 %v1628, %v1657
        %v1665 = vadd.f32 %v1629, %v1657
        %v1666 = vadd.f32 %v1630, %v1657
        %v1667 = vadd.f32 %v1631, %v1657
        %v1668 = vadd.f32 %v1632, %v1657
        %v1669 = vadd.f32 %v1633, %v1657
        %v1670 = vadd.f32 %v1634, %v1657
        %v1671 = vadd.f32 %v1635, %v1657
        %v1672 = vadd.f32 %v1636, %v1657
        %v1673 = vadd.f32 %v1637, %v1657
        %v1674 = vadd.f32 %v1638, %v1657
        %v1675 = vadd.f32 %v1639, %v1657
        %v1676 = vadd.f32 %v1640, %v1657
        %v1677 = vadd.f32 %v1641, %v1657
        %v1678 = vadd.f32 %v1642, %v1657
        %v1679 = vadd.f32 %v1643, %v1657
        %v1680 = vadd.f32 %v1644, %v1657
        %v1681 = vadd.f32 %v1645, %v1657
        %v1682 = vadd.f32 %v1646, %v1657
        %v1683 = vadd.f32 %v1647, %v1657
        %v1684 = vadd.f32 %v1648, %v1657
        %v1685 = vadd.f32 %v1649, %v1657
        %v1686 = vadd.f32 %v1650, %v1657
        %v1687 = vadd.f32 %v1651, %v1657
        %v1688 = vadd.f32 %v1652, %v1657
        %v1689 = vadd.f32 %v1653, %v1657
        %v1690 = vmax.f32 %v1658, 0.0
        %v1691 = vmax.f32 %v1659, 0.0
        %v1692 = vmax.f32 %v1660, 0.0
        %v1693 = vmax.f32 %v1661, 0.0
        %v1694 = vmax.f32 %v1662, 0.0
        %v1695 = vmax.f32 %v1663, 0.0
        %v1696 = vmax.f32 %v1664, 0.0
        %v1697 = vmax.f32 %v1665, 0.0
        %v1698 = vmax.f32 %v1666, 0.0
        %v1699 = vmax.f32 %v1667, 0.0
        %v1700 = vmax.f32 %v1668, 0.0
        %v1701 = vmax.f32 %v1669, 0.0
        %v1702 = vmax.f32 %v1670, 0.0
        %v1703 = vmax.f32 %v1671, 0.0
        %v1704 = vmax.f32 %v1672, 0.0
        %v1705 = vmax.f32 %v1673, 0.0
        %v1706 = vmax.f32 %v1674, 0.0
        %v1707 = vmax.f32 %v1675, 0.0
        %v1708 = vmax.f32 %v1676, 0.0
        %v1709 = vmax.f32 %v1677, 0.0
        %v1710 = vmax.f32 %v1678, 0.0
        %v1711 = vmax.f32 %v1679, 0.0
        %v1712 = vmax.f32 %v1680, 0.0
        %v1713 = vmax.f32 %v1681, 0.0
        %v1714 = vmax.f32 %v1682, 0.0
        %v1715 = vmax.f32 %v1683, 0.0
        %v1716 = vmax.f32 %v1684, 0.0
        %v1717 = vmax.f32 %v1685, 0.0
        %v1718 = vmax.f32 %v1686, 0.0
        %v1719 = vmax.f32 %v1687, 0.0
        %v1720 = vmax.f32 %v1688, 0.0
        %v1721 = vmax.f32 %v1689, 0.0
        %v1722 = vpack.c.bf16 %v1691, %v1690
        %v1723 = vpack.c.bf16 %v1693, %v1692
        %v1724 = vpack.c.bf16 %v1695, %v1694
        %v1725 = vpack.c.bf16 %v1697, %v1696
        %v1726 = vpack.c.bf16 %v1699, %v1698
        %v1727 = vpack.c.bf16 %v1701, %v1700
        %v1728 = vpack.c.bf16 %v1703, %v1702
        %v1729 = vpack.c.bf16 %v1705, %v1704
        %v1730 = vpack.c.bf16 %v1707, %v1706
        %v1731 = vpack.c.bf16 %v1709, %v1708
        %v1732 = vpack.c.bf16 %v1711, %v1710
        %v1733 = vpack.c.bf16 %v1713, %v1712
        %v1734 = vpack.c.bf16 %v1715, %v1714
        %v1735 = vpack.c.bf16 %v1717, %v1716
        %v1736 = vpack.c.bf16 %v1719, %v1718
        %v1737 = vpack.c.bf16 %v1721, %v1720
        %v1738 = vld [vmem:[%s3] sm:$0xf]
        %v1739 = vld [vmem:[%s3 + $0x4] sm:$0xf]
        %v1740 = vld [vmem:[%s3 + $0x8] sm:$0xf]
        %v1741 = vld [vmem:[%s3 + $0xc] sm:$0xf]
        %v1742 = vld [vmem:[%s3 + $0x10] sm:$0xf]
        %v1743 = vld [vmem:[%s3 + $0x14] sm:$0xf]
        %v1744 = vld [vmem:[%s3 + $0x18] sm:$0xf]
        %v1745 = vld [vmem:[%s3 + $0x1c] sm:$0xf]
        %v1746 = vld [vmem:[%s3 + $0x20] sm:$0xf]
        %v1747 = vld [vmem:[%s3 + $0x24] sm:$0xf]
        %v1748 = vld [vmem:[%s3 + $0x28] sm:$0xf]
        %v1749 = vld [vmem:[%s3 + $0x2c] sm:$0xf]
        %v1750 = vld [vmem:[%s3 + $0x30] sm:$0xf]
        %v1751 = vld [vmem:[%s3 + $0x34] sm:$0xf]
        %v1752 = vld [vmem:[%s3 + $0x38] sm:$0xf]
        %v1753 = vld [vmem:[%s3 + $0x3c] sm:$0xf]
        %v1754 = vlaneseq
        %v1755 = vshrl.u32 %v1754, 7
        %v1756 = vsub.s32 6, %v1755
        %v1757 = vrot.slane %v275, %v1756
        %v1774 = vunpack.c.l.b16 %v1738
        %v1775 = vunpack.c.l.b16 %v1739
        %v1776 = vunpack.c.l.b16 %v1740
        %v1777 = vunpack.c.l.b16 %v1741
        %v1778 = vunpack.c.l.b16 %v1742
        %v1779 = vunpack.c.l.b16 %v1743
        %v1780 = vunpack.c.l.b16 %v1744
        %v1781 = vunpack.c.l.b16 %v1745
        %v1782 = vunpack.c.l.b16 %v1746
        %v1783 = vunpack.c.l.b16 %v1747
        %v1784 = vunpack.c.l.b16 %v1748
        %v1785 = vunpack.c.l.b16 %v1749
        %v1786 = vunpack.c.l.b16 %v1750
        %v1787 = vunpack.c.l.b16 %v1751
        %v1788 = vunpack.c.l.b16 %v1752
        %v1789 = vunpack.c.l.b16 %v1753
        %v1790 = vpack.c.b16 %v1775, %v1774
        %v1791 = vpack.c.b16 %v1777, %v1776
        %v1792 = vpack.c.b16 %v1779, %v1778
        %v1793 = vpack.c.b16 %v1781, %v1780
        %v1794 = vpack.c.b16 %v1783, %v1782
        %v1795 = vpack.c.b16 %v1785, %v1784
        %v1796 = vpack.c.b16 %v1787, %v1786
        %v1797 = vpack.c.b16 %v1789, %v1788
        %1806 = vmatprep.subr.bf16.mxu0 0
        %1807 = vmatpush1.bf16.msra.mxu0 %v1790
        %1808 = vmatprep.subr.bf16.mxu0 0
        %1809 = vmatpush1.bf16.msra.mxu0 %v1791
        %1810 = vmatprep.subr.bf16.mxu0 0
        %1811 = vmatpush1.bf16.msra.mxu0 %v1792
        %1812 = vmatprep.subr.bf16.mxu0 0
        %1813 = vmatpush1.bf16.msra.mxu0 %v1793
        %1814 = vmatprep.subr.bf16.mxu0 0
        %1815 = vmatpush1.bf16.msra.mxu0 %v1794
        %1816 = vmatprep.subr.bf16.mxu0 0
        %1817 = vmatpush1.bf16.msra.mxu0 %v1795
        %1818 = vmatprep.subr.bf16.mxu0 0
        %1819 = vmatpush1.bf16.msra.mxu0 %v1796
        %1820 = vmatprep.subr.bf16.mxu0 0
        %1821 = vmatpush1.bf16.msra.mxu0 %v1797
        %1822 = vmatprep.subr.bf16.mxu0 0
        %1823 = vmatpush1.bf16.msra.mxu0 0
        %1824 = vmatprep.subr.bf16.mxu0 0
        %1825 = vmatpush1.bf16.msra.mxu0 0
        %1826 = vmatprep.subr.bf16.mxu0 0
        %1827 = vmatpush1.bf16.msra.mxu0 0
        %1828 = vmatprep.subr.bf16.mxu0 0
        %1829 = vmatpush1.bf16.msra.mxu0 0
        %1830 = vmatprep.subr.bf16.mxu0 0
        %1831 = vmatpush1.bf16.msra.mxu0 0
        %1832 = vmatprep.subr.bf16.mxu0 0
        %1833 = vmatpush1.bf16.msra.mxu0 0
        %1834 = vmatprep.subr.bf16.mxu0 0
        %1835 = vmatpush1.bf16.msra.mxu0 0
        %1836 = vmatprep.subr.bf16.mxu0 0
        %1837 = vmatpush1.bf16.msra.mxu0 0
        %1838 = vmatprep.mubr.bf16.mxu0 0
        %1839 = vmatmul.mubr.bf16.gmra.mrb[0].mxu0 %v1722
        %v1840 = vpop.f32.mrb[0].mxu0
        %v1841 = vadd.f32 %v1757, %v1840
        %v1842 = vpop.f32.mrb[0].mxu0
        %v1843 = vpop.f32.mrb[0].mxu0
        %v1844 = vadd.f32 %v1757, %v1843
        %v1845 = vpop.f32.mrb[0].mxu0
        %1846 = vmatprep.mubr.bf16.mxu0 0
        %1847 = vmatmul.mubr.bf16.gmra.mrb[0].mxu0 %v1723
        %v1848 = vpop.f32.mrb[0].mxu0
        %v1849 = vadd.f32 %v1757, %v1848
        %v1850 = vpop.f32.mrb[0].mxu0
        %v1851 = vpop.f32.mrb[0].mxu0
        %v1852 = vadd.f32 %v1757, %v1851
        %v1853 = vpop.f32.mrb[0].mxu0
        %1854 = vmatprep.mubr.bf16.mxu0 0
        %1855 = vmatmul.mubr.bf16.gmra.mrb[0].mxu0 %v1724
        %v1856 = vpop.f32.mrb[0].mxu0
        %v1857 = vadd.f32 %v1757, %v1856
        %v1858 = vpop.f32.mrb[0].mxu0
        %v1859 = vpop.f32.mrb[0].mxu0
        %v1860 = vadd.f32 %v1757, %v1859
        %v1861 = vpop.f32.mrb[0].mxu0
        %1862 = vmatprep.mubr.bf16.mxu0 0
        %1863 = vmatmul.mubr.bf16.gmra.mrb[0].mxu0 %v1725
        %v1864 = vpop.f32.mrb[0].mxu0
        %v1865 = vadd.f32 %v1757, %v1864
        %v1866 = vpop.f32.mrb[0].mxu0
        %v1867 = vpop.f32.mrb[0].mxu0
        %v1868 = vadd.f32 %v1757, %v1867
        %v1869 = vpop.f32.mrb[0].mxu0
        %1870 = vmatprep.mubr.bf16.mxu0 0
        %1871 = vmatmul.mubr.bf16.gmra.mrb[0].mxu0 %v1726
        %v1872 = vpop.f32.mrb[0].mxu0
        %v1873 = vadd.f32 %v1757, %v1872
        %v1874 = vpop.f32.mrb[0].mxu0
        %v1875 = vpop.f32.mrb[0].mxu0
        %v1876 = vadd.f32 %v1757, %v1875
        %v1877 = vpop.f32.mrb[0].mxu0
        %1878 = vmatprep.mubr.bf16.mxu0 0
        %1879 = vmatmul.mubr.bf16.gmra.mrb[0].mxu0 %v1727
        %v1880 = vpop.f32.mrb[0].mxu0
        %v1881 = vadd.f32 %v1757, %v1880
        %v1882 = vpop.f32.mrb[0].mxu0
        %v1883 = vpop.f32.mrb[0].mxu0
        %v1884 = vadd.f32 %v1757, %v1883
        %v1885 = vpop.f32.mrb[0].mxu0
        %1886 = vmatprep.mubr.bf16.mxu0 0
        %1887 = vmatmul.mubr.bf16.gmra.mrb[0].mxu0 %v1728
        %v1888 = vpop.f32.mrb[0].mxu0
        %v1889 = vadd.f32 %v1757, %v1888
        %v1890 = vpop.f32.mrb[0].mxu0
        %v1891 = vpop.f32.mrb[0].mxu0
        %v1892 = vadd.f32 %v1757, %v1891
        %v1893 = vpop.f32.mrb[0].mxu0
        %1894 = vmatprep.mubr.bf16.mxu0 0
        %1895 = vmatmul.mubr.bf16.gmra.mrb[0].mxu0 %v1729
        %v1896 = vpop.f32.mrb[0].mxu0
        %v1897 = vadd.f32 %v1757, %v1896
        %v1898 = vpop.f32.mrb[0].mxu0
        %v1899 = vpop.f32.mrb[0].mxu0
        %v1900 = vadd.f32 %v1757, %v1899
        %v1901 = vpop.f32.mrb[0].mxu0
        %1902 = vmatprep.mubr.bf16.mxu0 0
        %1903 = vmatmul.mubr.bf16.gmra.mrb[0].mxu0 %v1730
        %v1904 = vpop.f32.mrb[0].mxu0
        %v1905 = vadd.f32 %v1757, %v1904
        %v1906 = vpop.f32.mrb[0].mxu0
        %v1907 = vpop.f32.mrb[0].mxu0
        %v1908 = vadd.f32 %v1757, %v1907
        %v1909 = vpop.f32.mrb[0].mxu0
        %1910 = vmatprep.mubr.bf16.mxu0 0
        %1911 = vmatmul.mubr.bf16.gmra.mrb[0].mxu0 %v1731
        %v1912 = vpop.f32.mrb[0].mxu0
        %v1913 = vadd.f32 %v1757, %v1912
        %v1914 = vpop.f32.mrb[0].mxu0
        %v1915 = vpop.f32.mrb[0].mxu0
        %v1916 = vadd.f32 %v1757, %v1915
        %v1917 = vpop.f32.mrb[0].mxu0
        %1918 = vmatprep.mubr.bf16.mxu0 0
        %1919 = vmatmul.mubr.bf16.gmra.mrb[0].mxu0 %v1732
        %v1920 = vpop.f32.mrb[0].mxu0
        %v1921 = vadd.f32 %v1757, %v1920
        %v1922 = vpop.f32.mrb[0].mxu0
        %v1923 = vpop.f32.mrb[0].mxu0
        %v1924 = vadd.f32 %v1757, %v1923
        %v1925 = vpop.f32.mrb[0].mxu0
        %1926 = vmatprep.mubr.bf16.mxu0 0
        %1927 = vmatmul.mubr.bf16.gmra.mrb[0].mxu0 %v1733
        %v1928 = vpop.f32.mrb[0].mxu0
        %v1929 = vadd.f32 %v1757, %v1928
        %v1930 = vpop.f32.mrb[0].mxu0
        %v1931 = vpop.f32.mrb[0].mxu0
        %v1932 = vadd.f32 %v1757, %v1931
        %v1933 = vpop.f32.mrb[0].mxu0
        %1934 = vmatprep.mubr.bf16.mxu0 0
        %1935 = vmatmul.mubr.bf16.gmra.mrb[0].mxu0 %v1734
        %v1936 = vpop.f32.mrb[0].mxu0
        %v1937 = vadd.f32 %v1757, %v1936
        %v1938 = vpop.f32.mrb[0].mxu0
        %v1939 = vpop.f32.mrb[0].mxu0
        %v1940 = vadd.f32 %v1757, %v1939
        %v1941 = vpop.f32.mrb[0].mxu0
        %1942 = vmatprep.mubr.bf16.mxu0 0
        %1943 = vmatmul.mubr.bf16.gmra.mrb[0].mxu0 %v1735
        %v1944 = vpop.f32.mrb[0].mxu0
        %v1945 = vadd.f32 %v1757, %v1944
        %v1946 = vpop.f32.mrb[0].mxu0
        %v1947 = vpop.f32.mrb[0].mxu0
        %v1948 = vadd.f32 %v1757, %v1947
        %v1949 = vpop.f32.mrb[0].mxu0
        %1950 = vmatprep.mubr.bf16.mxu0 0
        %1951 = vmatmul.mubr.bf16.gmra.mrb[0].mxu0 %v1736
        %v1952 = vpop.f32.mrb[0].mxu0
        %v1953 = vadd.f32 %v1757, %v1952
        %v1954 = vpop.f32.mrb[0].mxu0
        %v1955 = vpop.f32.mrb[0].mxu0
        %v1956 = vadd.f32 %v1757, %v1955
        %v1957 = vpop.f32.mrb[0].mxu0
        %1958 = vmatprep.mubr.bf16.mxu0 0
        %1959 = vmatmul.mubr.bf16.gmra.mrb[0].mxu0 %v1737
        %v1960 = vpop.f32.mrb[0].mxu0
        %v1961 = vadd.f32 %v1757, %v1960
        %v1962 = vpop.f32.mrb[0].mxu0
        %v1963 = vpop.f32.mrb[0].mxu0
        %v1964 = vadd.f32 %v1757, %v1963
        %v1965 = vpop.f32.mrb[0].mxu0
        %1966 = vdwg.mxu0
        %1967 = vadd.xlane.f32.xlu0 %v1841
        %v1968 = vpop.xlane.xlu0 %1967
        %1969 = vadd.xlane.f32.xlu0 %v1844
        %v1970 = vpop.xlane.xlu0 %1969
        %1971 = vadd.xlane.f32.xlu0 %v1849
        %v1972 = vpop.xlane.xlu0 %1971
        %1973 = vadd.xlane.f32.xlu0 %v1852
        %v1974 = vpop.xlane.xlu0 %1973
        %1975 = vadd.xlane.f32.xlu0 %v1857
        %v1976 = vpop.xlane.xlu0 %1975
        %1977 = vadd.xlane.f32.xlu0 %v1860
        %v1978 = vpop.xlane.xlu0 %1977
        %1979 = vadd.xlane.f32.xlu0 %v1865
        %v1980 = vpop.xlane.xlu0 %1979
        %1981 = vadd.xlane.f32.xlu0 %v1868
        %v1982 = vpop.xlane.xlu0 %1981
        %1983 = vadd.xlane.f32.xlu0 %v1873
        %v1984 = vpop.xlane.xlu0 %1983
        %1985 = vadd.xlane.f32.xlu0 %v1876
        %v1986 = vpop.xlane.xlu0 %1985
        %1987 = vadd.xlane.f32.xlu0 %v1881
        %v1988 = vpop.xlane.xlu0 %1987
        %1989 = vadd.xlane.f32.xlu0 %v1884
        %v1990 = vpop.xlane.xlu0 %1989
        %1991 = vadd.xlane.f32.xlu0 %v1889
        %v1992 = vpop.xlane.xlu0 %1991
        %1993 = vadd.xlane.f32.xlu0 %v1892
        %v1994 = vpop.xlane.xlu0 %1993
        %1995 = vadd.xlane.f32.xlu0 %v1897
        %v1996 = vpop.xlane.xlu0 %1995
        %1997 = vadd.xlane.f32.xlu0 %v1900
        %v1998 = vpop.xlane.xlu0 %1997
        %1999 = vadd.xlane.f32.xlu0 %v1905
        %v2000 = vpop.xlane.xlu0 %1999
        %2001 = vadd.xlane.f32.xlu0 %v1908
        %v2002 = vpop.xlane.xlu0 %2001
        %2003 = vadd.xlane.f32.xlu0 %v1913
        %v2004 = vpop.xlane.xlu0 %2003
        %2005 = vadd.xlane.f32.xlu0 %v1916
        %v2006 = vpop.xlane.xlu0 %2005
        %2007 = vadd.xlane.f32.xlu0 %v1921
        %v2008 = vpop.xlane.xlu0 %2007
        %2009 = vadd.xlane.f32.xlu0 %v1924
        %v2010 = vpop.xlane.xlu0 %2009
        %2011 = vadd.xlane.f32.xlu0 %v1929
        %v2012 = vpop.xlane.xlu0 %2011
        %2013 = vadd.xlane.f32.xlu0 %v1932
        %v2014 = vpop.xlane.xlu0 %2013
        %2015 = vadd.xlane.f32.xlu0 %v1937
        %v2016 = vpop.xlane.xlu0 %2015
        %2017 = vadd.xlane.f32.xlu0 %v1940
        %v2018 = vpop.xlane.xlu0 %2017
        %2019 = vadd.xlane.f32.xlu0 %v1945
        %v2020 = vpop.xlane.xlu0 %2019
        %2021 = vadd.xlane.f32.xlu0 %v1948
        %v2022 = vpop.xlane.xlu0 %2021
        %2023 = vadd.xlane.f32.xlu0 %v1953
        %v2024 = vpop.xlane.xlu0 %2023
        %2025 = vadd.xlane.f32.xlu0 %v1956
        %v2026 = vpop.xlane.xlu0 %2025
        %2027 = vadd.xlane.f32.xlu0 %v1961
        %v2028 = vpop.xlane.xlu0 %2027
        %2029 = vadd.xlane.f32.xlu0 %v1964
        %v2030 = vpop.xlane.xlu0 %2029
        %v2031 = vmul.f32 %v1968, 0.03125
        %v2032 = vmul.f32 %v1970, 0.03125
        %v2033 = vmul.f32 %v1972, 0.03125
        %v2034 = vmul.f32 %v1974, 0.03125
        %v2035 = vmul.f32 %v1976, 0.03125
        %v2036 = vmul.f32 %v1978, 0.03125
        %v2037 = vmul.f32 %v1980, 0.03125
        %v2038 = vmul.f32 %v1982, 0.03125
        %v2039 = vmul.f32 %v1984, 0.03125
        %v2040 = vmul.f32 %v1986, 0.03125
        %v2041 = vmul.f32 %v1988, 0.03125
        %v2042 = vmul.f32 %v1990, 0.03125
        %v2043 = vmul.f32 %v1992, 0.03125
        %v2044 = vmul.f32 %v1994, 0.03125
        %v2045 = vmul.f32 %v1996, 0.03125
        %v2046 = vmul.f32 %v1998, 0.03125
        %v2047 = vmul.f32 %v2000, 0.03125
        %v2048 = vmul.f32 %v2002, 0.03125
        %v2049 = vmul.f32 %v2004, 0.03125
        %v2050 = vmul.f32 %v2006, 0.03125
        %v2051 = vmul.f32 %v2008, 0.03125
        %v2052 = vmul.f32 %v2010, 0.03125
        %v2053 = vmul.f32 %v2012, 0.03125
        %v2054 = vmul.f32 %v2014, 0.03125
        %v2055 = vmul.f32 %v2016, 0.03125
        %v2056 = vmul.f32 %v2018, 0.03125
        %v2057 = vmul.f32 %v2020, 0.03125
        %v2058 = vmul.f32 %v2022, 0.03125
        %v2059 = vmul.f32 %v2024, 0.03125
        %v2060 = vmul.f32 %v2026, 0.03125
        %v2061 = vmul.f32 %v2028, 0.03125
        %v2062 = vmul.f32 %v2030, 0.03125
        %v2063 = vsub.f32 %v1841, %v2031
        %v2064 = vsub.f32 %v1844, %v2032
        %v2065 = vsub.f32 %v1849, %v2033
        %v2066 = vsub.f32 %v1852, %v2034
        %v2067 = vsub.f32 %v1857, %v2035
        %v2068 = vsub.f32 %v1860, %v2036
        %v2069 = vsub.f32 %v1865, %v2037
        %v2070 = vsub.f32 %v1868, %v2038
        %v2071 = vsub.f32 %v1873, %v2039
        %v2072 = vsub.f32 %v1876, %v2040
        %v2073 = vsub.f32 %v1881, %v2041
        %v2074 = vsub.f32 %v1884, %v2042
        %v2075 = vsub.f32 %v1889, %v2043
        %v2076 = vsub.f32 %v1892, %v2044
        %v2077 = vsub.f32 %v1897, %v2045
        %v2078 = vsub.f32 %v1900, %v2046
        %v2079 = vsub.f32 %v1905, %v2047
        %v2080 = vsub.f32 %v1908, %v2048
        %v2081 = vsub.f32 %v1913, %v2049
        %v2082 = vsub.f32 %v1916, %v2050
        %v2083 = vsub.f32 %v1921, %v2051
        %v2084 = vsub.f32 %v1924, %v2052
        %v2085 = vsub.f32 %v1929, %v2053
        %v2086 = vsub.f32 %v1932, %v2054
        %v2087 = vsub.f32 %v1937, %v2055
        %v2088 = vsub.f32 %v1940, %v2056
        %v2089 = vsub.f32 %v1945, %v2057
        %v2090 = vsub.f32 %v1948, %v2058
        %v2091 = vsub.f32 %v1953, %v2059
        %v2092 = vsub.f32 %v1956, %v2060
        %v2093 = vsub.f32 %v1961, %v2061
        %v2094 = vsub.f32 %v1964, %v2062
        %v2095 = vsel %vm628, %v2063, 0.0
        %v2096 = vsel %vm628, %v2064, 0.0
        %v2097 = vsel %vm628, %v2065, 0.0
        %v2098 = vsel %vm628, %v2066, 0.0
        %v2099 = vsel %vm628, %v2067, 0.0
        %v2100 = vsel %vm628, %v2068, 0.0
        %v2101 = vsel %vm628, %v2069, 0.0
        %v2102 = vsel %vm628, %v2070, 0.0
        %v2103 = vsel %vm628, %v2071, 0.0
        %v2104 = vsel %vm628, %v2072, 0.0
        %v2105 = vsel %vm628, %v2073, 0.0
        %v2106 = vsel %vm628, %v2074, 0.0
        %v2107 = vsel %vm628, %v2075, 0.0
        %v2108 = vsel %vm628, %v2076, 0.0
        %v2109 = vsel %vm628, %v2077, 0.0
        %v2110 = vsel %vm628, %v2078, 0.0
        %v2111 = vsel %vm628, %v2079, 0.0
        %v2112 = vsel %vm628, %v2080, 0.0
        %v2113 = vsel %vm628, %v2081, 0.0
        %v2114 = vsel %vm628, %v2082, 0.0
        %v2115 = vsel %vm628, %v2083, 0.0
        %v2116 = vsel %vm628, %v2084, 0.0
        %v2117 = vsel %vm628, %v2085, 0.0
        %v2118 = vsel %vm628, %v2086, 0.0
        %v2119 = vsel %vm628, %v2087, 0.0
        %v2120 = vsel %vm628, %v2088, 0.0
        %v2121 = vsel %vm628, %v2089, 0.0
        %v2122 = vsel %vm628, %v2090, 0.0
        %v2123 = vsel %vm628, %v2091, 0.0
        %v2124 = vsel %vm628, %v2092, 0.0
        %v2125 = vsel %vm628, %v2093, 0.0
        %v2126 = vsel %vm628, %v2094, 0.0
        %v2127 = vmul.f32 %v2095, %v2095
        %v2128 = vmul.f32 %v2096, %v2096
        %v2129 = vmul.f32 %v2097, %v2097
        %v2130 = vmul.f32 %v2098, %v2098
        %v2131 = vmul.f32 %v2099, %v2099
        %v2132 = vmul.f32 %v2100, %v2100
        %v2133 = vmul.f32 %v2101, %v2101
        %v2134 = vmul.f32 %v2102, %v2102
        %v2135 = vmul.f32 %v2103, %v2103
        %v2136 = vmul.f32 %v2104, %v2104
        %v2137 = vmul.f32 %v2105, %v2105
        %v2138 = vmul.f32 %v2106, %v2106
        %v2139 = vmul.f32 %v2107, %v2107
        %v2140 = vmul.f32 %v2108, %v2108
        %v2141 = vmul.f32 %v2109, %v2109
        %v2142 = vmul.f32 %v2110, %v2110
        %v2143 = vmul.f32 %v2111, %v2111
        %v2144 = vmul.f32 %v2112, %v2112
        %v2145 = vmul.f32 %v2113, %v2113
        %v2146 = vmul.f32 %v2114, %v2114
        %v2147 = vmul.f32 %v2115, %v2115
        %v2148 = vmul.f32 %v2116, %v2116
        %v2149 = vmul.f32 %v2117, %v2117
        %v2150 = vmul.f32 %v2118, %v2118
        %v2151 = vmul.f32 %v2119, %v2119
        %v2152 = vmul.f32 %v2120, %v2120
        %v2153 = vmul.f32 %v2121, %v2121
        %v2154 = vmul.f32 %v2122, %v2122
        %v2155 = vmul.f32 %v2123, %v2123
        %v2156 = vmul.f32 %v2124, %v2124
        %v2157 = vmul.f32 %v2125, %v2125
        %v2158 = vmul.f32 %v2126, %v2126
        %2159 = vadd.xlane.f32.xlu0 %v2127
        %v2160 = vpop.xlane.xlu0 %2159
        %2161 = vadd.xlane.f32.xlu0 %v2128
        %v2162 = vpop.xlane.xlu0 %2161
        %2163 = vadd.xlane.f32.xlu0 %v2129
        %v2164 = vpop.xlane.xlu0 %2163
        %2165 = vadd.xlane.f32.xlu0 %v2130
        %v2166 = vpop.xlane.xlu0 %2165
        %2167 = vadd.xlane.f32.xlu0 %v2131
        %v2168 = vpop.xlane.xlu0 %2167
        %2169 = vadd.xlane.f32.xlu0 %v2132
        %v2170 = vpop.xlane.xlu0 %2169
        %2171 = vadd.xlane.f32.xlu0 %v2133
        %v2172 = vpop.xlane.xlu0 %2171
        %2173 = vadd.xlane.f32.xlu0 %v2134
        %v2174 = vpop.xlane.xlu0 %2173
        %2175 = vadd.xlane.f32.xlu0 %v2135
        %v2176 = vpop.xlane.xlu0 %2175
        %2177 = vadd.xlane.f32.xlu0 %v2136
        %v2178 = vpop.xlane.xlu0 %2177
        %2179 = vadd.xlane.f32.xlu0 %v2137
        %v2180 = vpop.xlane.xlu0 %2179
        %2181 = vadd.xlane.f32.xlu0 %v2138
        %v2182 = vpop.xlane.xlu0 %2181
        %2183 = vadd.xlane.f32.xlu0 %v2139
        %v2184 = vpop.xlane.xlu0 %2183
        %2185 = vadd.xlane.f32.xlu0 %v2140
        %v2186 = vpop.xlane.xlu0 %2185
        %2187 = vadd.xlane.f32.xlu0 %v2141
        %v2188 = vpop.xlane.xlu0 %2187
        %2189 = vadd.xlane.f32.xlu0 %v2142
        %v2190 = vpop.xlane.xlu0 %2189
        %2191 = vadd.xlane.f32.xlu0 %v2143
        %v2192 = vpop.xlane.xlu0 %2191
        %2193 = vadd.xlane.f32.xlu0 %v2144
        %v2194 = vpop.xlane.xlu0 %2193
        %2195 = vadd.xlane.f32.xlu0 %v2145
        %v2196 = vpop.xlane.xlu0 %2195
        %2197 = vadd.xlane.f32.xlu0 %v2146
        %v2198 = vpop.xlane.xlu0 %2197
        %2199 = vadd.xlane.f32.xlu0 %v2147
        %v2200 = vpop.xlane.xlu0 %2199
        %2201 = vadd.xlane.f32.xlu0 %v2148
        %v2202 = vpop.xlane.xlu0 %2201
        %2203 = vadd.xlane.f32.xlu0 %v2149
        %v2204 = vpop.xlane.xlu0 %2203
        %2205 = vadd.xlane.f32.xlu0 %v2150
        %v2206 = vpop.xlane.xlu0 %2205
        %2207 = vadd.xlane.f32.xlu0 %v2151
        %v2208 = vpop.xlane.xlu0 %2207
        %2209 = vadd.xlane.f32.xlu0 %v2152
        %v2210 = vpop.xlane.xlu0 %2209
        %2211 = vadd.xlane.f32.xlu0 %v2153
        %v2212 = vpop.xlane.xlu0 %2211
        %2213 = vadd.xlane.f32.xlu0 %v2154
        %v2214 = vpop.xlane.xlu0 %2213
        %2215 = vadd.xlane.f32.xlu0 %v2155
        %v2216 = vpop.xlane.xlu0 %2215
        %2217 = vadd.xlane.f32.xlu0 %v2156
        %v2218 = vpop.xlane.xlu0 %2217
        %2219 = vadd.xlane.f32.xlu0 %v2157
        %v2220 = vpop.xlane.xlu0 %2219
        %2221 = vadd.xlane.f32.xlu0 %v2158
        %v2222 = vpop.xlane.xlu0 %2221
        %v2223 = vmul.f32 %v2160, 0.03125
        %v2224 = vmul.f32 %v2162, 0.03125
        %v2225 = vmul.f32 %v2164, 0.03125
        %v2226 = vmul.f32 %v2166, 0.03125
        %v2227 = vmul.f32 %v2168, 0.03125
        %v2228 = vmul.f32 %v2170, 0.03125
        %v2229 = vmul.f32 %v2172, 0.03125
        %v2230 = vmul.f32 %v2174, 0.03125
        %v2231 = vmul.f32 %v2176, 0.03125
        %v2232 = vmul.f32 %v2178, 0.03125
        %v2233 = vmul.f32 %v2180, 0.03125
        %v2234 = vmul.f32 %v2182, 0.03125
        %v2235 = vmul.f32 %v2184, 0.03125
        %v2236 = vmul.f32 %v2186, 0.03125
        %v2237 = vmul.f32 %v2188, 0.03125
        %v2238 = vmul.f32 %v2190, 0.03125
        %v2239 = vmul.f32 %v2192, 0.03125
        %v2240 = vmul.f32 %v2194, 0.03125
        %v2241 = vmul.f32 %v2196, 0.03125
        %v2242 = vmul.f32 %v2198, 0.03125
        %v2243 = vmul.f32 %v2200, 0.03125
        %v2244 = vmul.f32 %v2202, 0.03125
        %v2245 = vmul.f32 %v2204, 0.03125
        %v2246 = vmul.f32 %v2206, 0.03125
        %v2247 = vmul.f32 %v2208, 0.03125
        %v2248 = vmul.f32 %v2210, 0.03125
        %v2249 = vmul.f32 %v2212, 0.03125
        %v2250 = vmul.f32 %v2214, 0.03125
        %v2251 = vmul.f32 %v2216, 0.03125
        %v2252 = vmul.f32 %v2218, 0.03125
        %v2253 = vmul.f32 %v2220, 0.03125
        %v2254 = vmul.f32 %v2222, 0.03125
        %v2255 = vadd.f32 %v2223, 1e-05
        %v2256 = vadd.f32 %v2224, 1e-05
        %v2257 = vadd.f32 %v2225, 1e-05
        %v2258 = vadd.f32 %v2226, 1e-05
        %v2259 = vadd.f32 %v2227, 1e-05
        %v2260 = vadd.f32 %v2228, 1e-05
        %v2261 = vadd.f32 %v2229, 1e-05
        %v2262 = vadd.f32 %v2230, 1e-05
        %v2263 = vadd.f32 %v2231, 1e-05
        %v2264 = vadd.f32 %v2232, 1e-05
        %v2265 = vadd.f32 %v2233, 1e-05
        %v2266 = vadd.f32 %v2234, 1e-05
        %v2267 = vadd.f32 %v2235, 1e-05
        %v2268 = vadd.f32 %v2236, 1e-05
        %v2269 = vadd.f32 %v2237, 1e-05
        %v2270 = vadd.f32 %v2238, 1e-05
        %v2271 = vadd.f32 %v2239, 1e-05
        %v2272 = vadd.f32 %v2240, 1e-05
        %v2273 = vadd.f32 %v2241, 1e-05
        %v2274 = vadd.f32 %v2242, 1e-05
        %v2275 = vadd.f32 %v2243, 1e-05
        %v2276 = vadd.f32 %v2244, 1e-05
        %v2277 = vadd.f32 %v2245, 1e-05
        %v2278 = vadd.f32 %v2246, 1e-05
        %v2279 = vadd.f32 %v2247, 1e-05
        %v2280 = vadd.f32 %v2248, 1e-05
        %v2281 = vadd.f32 %v2249, 1e-05
        %v2282 = vadd.f32 %v2250, 1e-05
        %v2283 = vadd.f32 %v2251, 1e-05
        %v2284 = vadd.f32 %v2252, 1e-05
        %v2285 = vadd.f32 %v2253, 1e-05
        %v2286 = vadd.f32 %v2254, 1e-05
        %v2287 = vrsqrt.pop %v2255
        %v2288 = vrsqrt.pop %v2256
        %v2289 = vrsqrt.pop %v2257
        %v2290 = vrsqrt.pop %v2258
        %v2291 = vrsqrt.pop %v2259
        %v2292 = vrsqrt.pop %v2260
        %v2293 = vrsqrt.pop %v2261
        %v2294 = vrsqrt.pop %v2262
        %v2295 = vrsqrt.pop %v2263
        %v2296 = vrsqrt.pop %v2264
        %v2297 = vrsqrt.pop %v2265
        %v2298 = vrsqrt.pop %v2266
        %v2299 = vrsqrt.pop %v2267
        %v2300 = vrsqrt.pop %v2268
        %v2301 = vrsqrt.pop %v2269
        %v2302 = vrsqrt.pop %v2270
        %v2303 = vrsqrt.pop %v2271
        %v2304 = vrsqrt.pop %v2272
        %v2305 = vrsqrt.pop %v2273
        %v2306 = vrsqrt.pop %v2274
        %v2307 = vrsqrt.pop %v2275
        %v2308 = vrsqrt.pop %v2276
        %v2309 = vrsqrt.pop %v2277
        %v2310 = vrsqrt.pop %v2278
        %v2311 = vrsqrt.pop %v2279
        %v2312 = vrsqrt.pop %v2280
        %v2313 = vrsqrt.pop %v2281
        %v2314 = vrsqrt.pop %v2282
        %v2315 = vrsqrt.pop %v2283
        %v2316 = vrsqrt.pop %v2284
        %v2317 = vrsqrt.pop %v2285
        %v2318 = vrsqrt.pop %v2286
        %v2319 = vmul.f32 %v2095, %v2287
        %v2320 = vmul.f32 %v2096, %v2288
        %v2321 = vmul.f32 %v2097, %v2289
        %v2322 = vmul.f32 %v2098, %v2290
        %v2323 = vmul.f32 %v2099, %v2291
        %v2324 = vmul.f32 %v2100, %v2292
        %v2325 = vmul.f32 %v2101, %v2293
        %v2326 = vmul.f32 %v2102, %v2294
        %v2327 = vmul.f32 %v2103, %v2295
        %v2328 = vmul.f32 %v2104, %v2296
        %v2329 = vmul.f32 %v2105, %v2297
        %v2330 = vmul.f32 %v2106, %v2298
        %v2331 = vmul.f32 %v2107, %v2299
        %v2332 = vmul.f32 %v2108, %v2300
        %v2333 = vmul.f32 %v2109, %v2301
        %v2334 = vmul.f32 %v2110, %v2302
        %v2335 = vmul.f32 %v2111, %v2303
        %v2336 = vmul.f32 %v2112, %v2304
        %v2337 = vmul.f32 %v2113, %v2305
        %v2338 = vmul.f32 %v2114, %v2306
        %v2339 = vmul.f32 %v2115, %v2307
        %v2340 = vmul.f32 %v2116, %v2308
        %v2341 = vmul.f32 %v2117, %v2309
        %v2342 = vmul.f32 %v2118, %v2310
        %v2343 = vmul.f32 %v2119, %v2311
        %v2344 = vmul.f32 %v2120, %v2312
        %v2345 = vmul.f32 %v2121, %v2313
        %v2346 = vmul.f32 %v2122, %v2314
        %v2347 = vmul.f32 %v2123, %v2315
        %v2348 = vmul.f32 %v2124, %v2316
        %v2349 = vmul.f32 %v2125, %v2317
        %v2350 = vmul.f32 %v2126, %v2318
        %v2351 = vlaneseq
        %v2352 = vshrl.u32 %v2351, 7
        %v2353 = vsub.s32 7, %v2352
        %v2354 = vrot.slane %v275, %v2353
        %v2355 = vmul.f32 %v2319, %v2354
        %v2356 = vmul.f32 %v2320, %v2354
        %v2357 = vmul.f32 %v2321, %v2354
        %v2358 = vmul.f32 %v2322, %v2354
        %v2359 = vmul.f32 %v2323, %v2354
        %v2360 = vmul.f32 %v2324, %v2354
        %v2361 = vmul.f32 %v2325, %v2354
        %v2362 = vmul.f32 %v2326, %v2354
        %v2363 = vmul.f32 %v2327, %v2354
        %v2364 = vmul.f32 %v2328, %v2354
        %v2365 = vmul.f32 %v2329, %v2354
        %v2366 = vmul.f32 %v2330, %v2354
        %v2367 = vmul.f32 %v2331, %v2354
        %v2368 = vmul.f32 %v2332, %v2354
        %v2369 = vmul.f32 %v2333, %v2354
        %v2370 = vmul.f32 %v2334, %v2354
        %v2371 = vmul.f32 %v2335, %v2354
        %v2372 = vmul.f32 %v2336, %v2354
        %v2373 = vmul.f32 %v2337, %v2354
        %v2374 = vmul.f32 %v2338, %v2354
        %v2375 = vmul.f32 %v2339, %v2354
        %v2376 = vmul.f32 %v2340, %v2354
        %v2377 = vmul.f32 %v2341, %v2354
        %v2378 = vmul.f32 %v2342, %v2354
        %v2379 = vmul.f32 %v2343, %v2354
        %v2380 = vmul.f32 %v2344, %v2354
        %v2381 = vmul.f32 %v2345, %v2354
        %v2382 = vmul.f32 %v2346, %v2354
        %v2383 = vmul.f32 %v2347, %v2354
        %v2384 = vmul.f32 %v2348, %v2354
        %v2385 = vmul.f32 %v2349, %v2354
        %v2386 = vmul.f32 %v2350, %v2354
        %v2387 = vlaneseq
        %v2388 = vshrl.u32 %v2387, 7
        %v2389 = vsub.s32 0, %v2388
        %v2390 = vrot.slane %v276, %v2389
        %v2391 = vadd.f32 %v2355, %v2390
        %v2392 = vadd.f32 %v2356, %v2390
        %v2393 = vadd.f32 %v2357, %v2390
        %v2394 = vadd.f32 %v2358, %v2390
        %v2395 = vadd.f32 %v2359, %v2390
        %v2396 = vadd.f32 %v2360, %v2390
        %v2397 = vadd.f32 %v2361, %v2390
        %v2398 = vadd.f32 %v2362, %v2390
        %v2399 = vadd.f32 %v2363, %v2390
        %v2400 = vadd.f32 %v2364, %v2390
        %v2401 = vadd.f32 %v2365, %v2390
        %v2402 = vadd.f32 %v2366, %v2390
        %v2403 = vadd.f32 %v2367, %v2390
        %v2404 = vadd.f32 %v2368, %v2390
        %v2405 = vadd.f32 %v2369, %v2390
        %v2406 = vadd.f32 %v2370, %v2390
        %v2407 = vadd.f32 %v2371, %v2390
        %v2408 = vadd.f32 %v2372, %v2390
        %v2409 = vadd.f32 %v2373, %v2390
        %v2410 = vadd.f32 %v2374, %v2390
        %v2411 = vadd.f32 %v2375, %v2390
        %v2412 = vadd.f32 %v2376, %v2390
        %v2413 = vadd.f32 %v2377, %v2390
        %v2414 = vadd.f32 %v2378, %v2390
        %v2415 = vadd.f32 %v2379, %v2390
        %v2416 = vadd.f32 %v2380, %v2390
        %v2417 = vadd.f32 %v2381, %v2390
        %v2418 = vadd.f32 %v2382, %v2390
        %v2419 = vadd.f32 %v2383, %v2390
        %v2420 = vadd.f32 %v2384, %v2390
        %v2421 = vadd.f32 %v2385, %v2390
        %v2422 = vadd.f32 %v2386, %v2390
        %2423 = vst [vmem:[%s218] sm:$0xff] %v2391
        %2424 = vst [vmem:[%s218 + $0x8] sm:$0xff] %v2392
        %2425 = vst [vmem:[%s218 + $0x10] sm:$0xff] %v2393
        %2426 = vst [vmem:[%s218 + $0x18] sm:$0xff] %v2394
        %2427 = vst [vmem:[%s218 + $0x20] sm:$0xff] %v2395
        %2428 = vst [vmem:[%s218 + $0x28] sm:$0xff] %v2396
        %2429 = vst [vmem:[%s218 + $0x30] sm:$0xff] %v2397
        %2430 = vst [vmem:[%s218 + $0x38] sm:$0xff] %v2398
        %2431 = vst [vmem:[%s218 + $0x40] sm:$0xff] %v2399
        %2432 = vst [vmem:[%s218 + $0x48] sm:$0xff] %v2400
        %2433 = vst [vmem:[%s218 + $0x50] sm:$0xff] %v2401
        %2434 = vst [vmem:[%s218 + $0x58] sm:$0xff] %v2402
        %2435 = vst [vmem:[%s218 + $0x60] sm:$0xff] %v2403
        %2436 = vst [vmem:[%s218 + $0x68] sm:$0xff] %v2404
        %2437 = vst [vmem:[%s218 + $0x70] sm:$0xff] %v2405
        %2438 = vst [vmem:[%s218 + $0x78] sm:$0xff] %v2406
        %2439 = vst [vmem:[%s218 + $0x80] sm:$0xff] %v2407
        %2440 = vst [vmem:[%s218 + $0x88] sm:$0xff] %v2408
        %2441 = vst [vmem:[%s218 + $0x90] sm:$0xff] %v2409
        %2442 = vst [vmem:[%s218 + $0x98] sm:$0xff] %v2410
        %2443 = vst [vmem:[%s218 + $0xa0] sm:$0xff] %v2411
        %2444 = vst [vmem:[%s218 + $0xa8] sm:$0xff] %v2412
        %2445 = vst [vmem:[%s218 + $0xb0] sm:$0xff] %v2413
        %2446 = vst [vmem:[%s218 + $0xb8] sm:$0xff] %v2414
        %2447 = vst [vmem:[%s218 + $0xc0] sm:$0xff] %v2415
        %2448 = vst [vmem:[%s218 + $0xc8] sm:$0xff] %v2416
        %2449 = vst [vmem:[%s218 + $0xd0] sm:$0xff] %v2417
        %2450 = vst [vmem:[%s218 + $0xd8] sm:$0xff] %v2418
        %2451 = vst [vmem:[%s218 + $0xe0] sm:$0xff] %v2419
        %2452 = vst [vmem:[%s218 + $0xe8] sm:$0xff] %v2420
        %2453 = vst [vmem:[%s218 + $0xf0] sm:$0xff] %v2421
        %2454 = vst [vmem:[%s218 + $0xf8] sm:$0xff] %v2422
        %s2455 = sand.u32 %s137, 1
        %s2456 = scalar_lea.sflag [#allocation3], %s2455
        %s2457 = sand.u32 %s137, 1
        %s2458 = smul.addr %s2457, 256
        %s2459 = scalar_lea.vmem [#allocation2], %s2458
        // Predicated region
        $region41: #{tpu_custom_call.1} parent=39 // pred_check
          %p2460 = pneg %p147
        $region42: #{tpu_custom_call.1} parent=39 // pred_check_branch
          %2462 = sbr.rel (%p2460) target = $region44
        $region43: #{tpu_custom_call.1} parent=39 // pred_region
          %s2463 = smul.u32 32, %s19
          %s2465 = ssub.s32 4096, 4096
          %2466 = vsyncadd %s2456, %s2465
          %s2467 = smul.addr %s2463, 128
          %s2468 = scalar_lea.hbm %s5, %s2467
          %s2469 = sshll.u32 %s2459, 4
          %s2470 = int_to_ptr.vmem [resolvable:$true] %s2469
          %2475 = dma.vmem_to_hbm [thread:$0]  %s2470, 4096, %s2468, %s2456, 128, 128, 8
        $region44: #{tpu_custom_call.1} parent=39 // pred_fallthru
          _
      $region40: #{tpu_custom_call.1} parent=5 // pred_fallthru
        _
      %p2476 = scmp.le.s32.totalorder 2, %s14
      // Predicated region
      $region45: #{tpu_custom_call.1} parent=5 // pred_check
        %p2477 = pneg %p2476
      $region46: #{tpu_custom_call.1} parent=5 // pred_check_branch
        %2479 = sbr.rel (%p2477) target = $region48
      $region47: #{tpu_custom_call.1} parent=5 // pred_region
        %s2480 = ssub.s32 %s14, 2
        // Predicated region
        $region49: #{tpu_custom_call.1} parent=47 // pred_check
          %p2481 = pneg %p153
        $region50: #{tpu_custom_call.1} parent=47 // pred_check_branch
          %2483 = sbr.rel (%p2481) target = $region52
        $region51: #{tpu_custom_call.1} parent=47 // pred_region
          %s2484 = sand.u32 %s138, 1
          %s2485 = scalar_lea.sflag [#allocation3], %s2484
          %s2486 = sand.u32 %s138, 1
          %s2487 = smul.addr %s2486, 256
          %s2488 = scalar_lea.vmem [#allocation2], %s2487
          %2489 = dma.done %s2485, 4096
        $region52: #{tpu_custom_call.1} parent=47 // pred_fallthru
          _
      $region48: #{tpu_custom_call.1} parent=5 // pred_fallthru
        _
    $region6: #{tpu_custom_call.1} parent=1 // loop_footer
      %s18 = sadd.s32 1, %s14
    $region7: #{tpu_custom_call.1} parent=1 // loop_footer_branch
      %13 = sbr.rel target = $region3
    $region8: #{tpu_custom_call.1} parent=1 // loop_exit
      _
    %2490 = vsyncpa [#allocation3], 1
    %s2491 = scalar_lea.sflag [#allocation3], 1
    %2492 = vsyncpa %s2491, 1

</llo_original>
